<compile_context>
chip_gen: v7x
topology: tpu7x:2x2x1
jax: 0.10.0
libtpu: 0.0.40
codegen_flags: <defaults>
</compile_context>

<pallas_src>
import functools

import jax
import jax.numpy as jnp
from jax import lax
from jax.experimental import pallas as pl
from jax.experimental.pallas import tpu as pltpu

_COMPUTE_DTYPE = jnp.bfloat16  # MXU-friendly dtype for activations and weights.


@functools.lru_cache(maxsize=None)
def _vmem_limit_bytes():
    """~3/4 of physical VMEM (96 MiB on 128-MiB v5e/v6e, 48 MiB on 64-MiB v7x)."""
    cap = 64 * 1024 * 1024
    try:
        info = pltpu.get_tpu_info()
        cap = int(getattr(info, "vmem_capacity_bytes", cap)) or cap
    except Exception:
        pass
    return max(32 * 1024 * 1024, min(int(cap * 3 // 4), 112 * 1024 * 1024))


def _compiler_params(n_parallel_axes=1):
    return pltpu.CompilerParams(
        dimension_semantics=("parallel",) * n_parallel_axes,
        vmem_limit_bytes=_vmem_limit_bytes(),
    )


# ---------------------------------------------------------------------------
# In-kernel helpers (operate on VMEM values)
# ---------------------------------------------------------------------------
def _maxpool2x2_value(x):
    """2x2 / stride-2 max pooling on an (2H, 2W, C) VMEM value -> (H, W, C)."""
    H2, W2, C = x.shape
    Ho, Wo = H2 // 2, W2 // 2
    xr = x.reshape(Ho, 2, W2, C)
    rows = jnp.maximum(xr[:, 0], xr[:, 1])
    rr = rows.reshape(Ho, Wo, 2, C)
    return jnp.maximum(rr[:, :, 0], rr[:, :, 1])


def _im2col_3x3(x, H, W):
    """(H, W, C) -> (H*W, 9*C): 1-pixel zero halo + tap stacking, all in VMEM."""
    C = x.shape[-1]
    zr = jnp.zeros((1, W, C), x.dtype)
    xv = jnp.concatenate([zr, x, zr], axis=0)          # (H+2, W, C)
    zc = jnp.zeros((H + 2, 1, C), x.dtype)
    xp = jnp.concatenate([zc, xv, zc], axis=1)         # (H+2, W+2, C)
    taps = [xp[dy:dy + H, dx:dx + W, :] for dy in range(3) for dx in range(3)]
    return jnp.concatenate(taps, axis=-1).reshape(H * W, 9 * C)


# ---------------------------------------------------------------------------
# Pallas kernels
# ---------------------------------------------------------------------------
def _conv3x3_kernel(*refs, H, W, n_inputs, pool_input, apply_relu):
    """3x3 conv (pad=1) as a single (HW, 9*Cin) x (9*Cin, Cout) bf16 MXU dot per input,
    f32 accumulation.  Optional fused 2x2 max-pool of the input and fused channel-concat
    of multiple inputs (decoder skip connection)."""
    x_refs = refs[:n_inputs]
    w_refs = refs[n_inputs:2 * n_inputs]
    b_ref = refs[2 * n_inputs]
    o_ref = refs[2 * n_inputs + 1]
    Cout = o_ref.shape[-1]

    acc = jnp.zeros((H * W, Cout), jnp.float32)
    for x_ref, w_ref in zip(x_refs, w_refs):
        x = x_ref[0]
        if pool_input:
            x = _maxpool2x2_value(x)
        acc = acc + jnp.dot(_im2col_3x3(x, H, W), w_ref[...],
                            preferred_element_type=jnp.float32)
    acc = acc + b_ref[...]
    if apply_relu:
        acc = jnp.maximum(acc, 0.0)
    o_ref[...] = acc.reshape(1, H, W, Cout).astype(o_ref.dtype)


def _deconv_s2_kernel(x_ref, w0_ref, w1_ref, w2_ref, w3_ref, b_ref, o_ref, *, H, W):
    """Subpixel ConvTranspose2d(k=3, s=2, p=1, output_padding=1) + ReLU.

    The four output parities are computed as K-folded MXU dots (taps stacked along the
    contraction dim) and pixel-shuffled into the (2H, 2W) output inside VMEM.
    x_ref: (1, H, W, Cin); w*_ref: per-phase flattened correlation weights; o_ref:
    (1, 2H, 2W, Cout).
    """
    Cin = x_ref.shape[-1]
    Cout = o_ref.shape[-1]
    dt = x_ref.dtype
    x00 = x_ref[0]                                                      # x[a,   b  ]
    zc = jnp.zeros((H, 1, Cin), dt)
    zr = jnp.zeros((1, W, Cin), dt)
    x01 = (jnp.concatenate([x00[:, 1:, :], zc], axis=1) if W > 1
           else jnp.zeros((H, W, Cin), dt))                             # x[a,   b+1]
    x10 = (jnp.concatenate([x00[1:, :, :], zr], axis=0) if H > 1
           else jnp.zeros((H, W, Cin), dt))                             # x[a+1, b  ]
    x11 = (jnp.concatenate([x10[:, 1:, :], zc], axis=1) if (H > 1 and W > 1)
           else jnp.zeros((H, W, Cin), dt))                             # x[a+1, b+1]

    HW = H * W
    f00 = x00.reshape(HW, Cin)
    f01 = x01.reshape(HW, Cin)
    f10 = x10.reshape(HW, Cin)
    f11 = x11.reshape(HW, Cin)
    bias = b_ref[...]

    def phase(lhs, w_ref):
        acc = jnp.dot(lhs, w_ref[...], preferred_element_type=jnp.float32) + bias
        return jnp.maximum(acc, 0.0).astype(o_ref.dtype).reshape(H, W, Cout)

    y00 = phase(f00, w0_ref)                                            # -> (2a,   2b  )
    y01 = phase(jnp.concatenate([f00, f01], axis=-1), w1_ref)           # -> (2a,   2b+1)
    y10 = phase(jnp.concatenate([f00, f10], axis=-1), w2_ref)           # -> (2a+1, 2b  )
    y11 = phase(jnp.concatenate([f00, f01, f10, f11], axis=-1), w3_ref)  # -> (2a+1, 2b+1)

    # Pixel-shuffle in VMEM: interleave columns, then rows.
    even = jnp.stack([y00, y01], axis=2).reshape(H, 2 * W, Cout)
    odd = jnp.stack([y10, y11], axis=2).reshape(H, 2 * W, Cout)
    out = jnp.stack([even, odd], axis=1).reshape(2 * H, 2 * W, Cout)
    o_ref[...] = out.reshape(1, 2 * H, 2 * W, Cout)


def _head1x1_kernel(x_ref, w_ref, b_ref, o_ref, *, n_valid, log_softmax):
    """1x1 conv head (lane-dense, Cout padded to 128) + optional channel log_softmax."""
    logits = jnp.dot(x_ref[...], w_ref[...],
                     preferred_element_type=jnp.float32) + b_ref[...]
    if log_softmax:
        lane = lax.broadcasted_iota(jnp.int32, logits.shape, 1)
        logits = jnp.where(lane < n_valid, logits, -1e30)   # mask pad classes
        m = jnp.max(logits, axis=-1, keepdims=True)
        s = logits - m
        lse = jnp.log(jnp.sum(jnp.exp(s), axis=-1, keepdims=True))
        logits = s - lse
    o_ref[...] = logits.astype(o_ref.dtype)


# ---------------------------------------------------------------------------
# Layer wrappers
# ---------------------------------------------------------------------------
def conv3x3_relu(xs, w, b, *, pool_input=False, apply_relu=True):
    """nn.Conv2d(Cin, Cout, 3, padding=1) (+ReLU) on NHWC bf16.

    xs: one NHWC tensor or a list of NHWC tensors treated as channel-concatenated
    (fused skip connection).  pool_input=True fuses a leading MaxPool2d(2).
    """
    if not isinstance(xs, (list, tuple)):
        xs = [xs]
    assert not (pool_input and len(xs) > 1)
    N, Hi, Wi = xs[0].shape[0], xs[0].shape[1], xs[0].shape[2]
    for t in xs:
        assert t.shape[:3] == (N, Hi, Wi)
    H, W = (Hi // 2, Wi // 2) if pool_input else (Hi, Wi)
    cins = [int(t.shape[-1]) for t in xs]
    Cout = int(w.shape[-1])
    assert sum(cins) == int(w.shape[2])

    # Split the (3,3,sum(Cin),Cout) weight per input and flatten the taps into the MXU
    # contraction dim: (9*Cin_j, Cout).  Pad tiny Cin (enc1_1: 3) to a multiple of 8.
    xqs, wqs = [], []
    off = 0
    for t, cj in zip(xs, cins):
        wj = w[:, :, off:off + cj, :]
        off += cj
        tq = t.astype(_COMPUTE_DTYPE)
        pad_c = (-cj) % 8
        if pad_c:
            tq = jnp.pad(tq, ((0, 0), (0, 0), (0, 0), (0, pad_c)))
            wj = jnp.pad(wj, ((0, 0), (0, 0), (0, pad_c), (0, 0)))
        xqs.append(tq)
        wqs.append(wj.reshape(9 * (cj + pad_c), Cout).astype(_COMPUTE_DTYPE))

    kernel = functools.partial(_conv3x3_kernel, H=H, W=W, n_inputs=len(xs),
                               pool_input=pool_input, apply_relu=apply_relu)
    in_specs = (
        [pl.BlockSpec((1, Hi, Wi, int(t.shape[-1])), lambda n: (n, 0, 0, 0))
         for t in xqs]
        + [pl.BlockSpec(tuple(wq.shape), lambda n: (0, 0)) for wq in wqs]
        + [pl.BlockSpec((1, Cout), lambda n: (0, 0))]
    )
    return pl.pallas_call(
        kernel,
        out_shape=jax.ShapeDtypeStruct((N, H, W, Cout), _COMPUTE_DTYPE),
        grid_spec=pltpu.PrefetchScalarGridSpec(
            num_scalar_prefetch=0,
            grid=(N,),
            in_specs=in_specs,
            out_specs=pl.BlockSpec((1, H, W, Cout), lambda n: (n, 0, 0, 0)),
        ),
        compiler_params=_compiler_params(1),
    )(*xqs, *wqs, b.reshape(1, Cout).astype(jnp.float32))


def conv_transpose3x3_s2_relu(x, w, b):
    """nn.ConvTranspose2d(Cin, Cout, 3, stride=2, padding=1, output_padding=1) + ReLU.

    `w` is the equivalent correlation kernel (3, 3, Cin, Cout): a real PyTorch deconv
    weight (Cin, Cout, 3, 3) must be spatially flipped and channel-transposed to this
    layout before being passed in (weights here are synthetic).
    """
    N, H, W, Cin = x.shape
    Cout = int(w.shape[-1])
    w9 = w.reshape(9, Cin, Cout).astype(_COMPUTE_DTYPE)
    # Per-phase K-folded weights (taps stacked along the contraction dim).
    w_p0 = w9[4]                                              # (Cin,  Cout)
    w_p1 = jnp.concatenate([w9[3], w9[5]], axis=0)            # (2Cin, Cout)
    w_p2 = jnp.concatenate([w9[1], w9[7]], axis=0)            # (2Cin, Cout)
    w_p3 = jnp.concatenate([w9[0], w9[2], w9[6], w9[8]], axis=0)  # (4Cin, Cout)
    kernel = functools.partial(_deconv_s2_kernel, H=H, W=W)
    return pl.pallas_call(
        kernel,
        out_shape=jax.ShapeDtypeStruct((N, 2 * H, 2 * W, Cout), _COMPUTE_DTYPE),
        grid_spec=pltpu.PrefetchScalarGridSpec(
            num_scalar_prefetch=0,
            grid=(N,),
            in_specs=[
                pl.BlockSpec((1, H, W, Cin), lambda n: (n, 0, 0, 0)),
                pl.BlockSpec((Cin, Cout), lambda n: (0, 0)),
                pl.BlockSpec((2 * Cin, Cout), lambda n: (0, 0)),
                pl.BlockSpec((2 * Cin, Cout), lambda n: (0, 0)),
                pl.BlockSpec((4 * Cin, Cout), lambda n: (0, 0)),
                pl.BlockSpec((1, Cout), lambda n: (0, 0)),
            ],
            out_specs=pl.BlockSpec((1, 2 * H, 2 * W, Cout), lambda n: (n, 0, 0, 0)),
        ),
        compiler_params=_compiler_params(1),
    )(x.astype(_COMPUTE_DTYPE), w_p0, w_p1, w_p2, w_p3,
      b.reshape(1, Cout).astype(jnp.float32))


def output_conv1x1(x, w, b, *, log_softmax):
    """OutputConv (1x1 conv) + optional channel log_softmax, lane-dense output."""
    N, H, W, C = x.shape
    n_classes = int(w.shape[-1])
    Cp = pl.cdiv(max(n_classes, 1), 128) * 128
    wq = jnp.zeros((C, Cp), _COMPUTE_DTYPE).at[:, :n_classes].set(
        w.reshape(C, n_classes).astype(_COMPUTE_DTYPE))
    bq = jnp.zeros((1, Cp), jnp.float32).at[:, :n_classes].set(
        b.reshape(1, n_classes).astype(jnp.float32))

    M = N * H * W
    tm = min(512, M)
    Mp = pl.cdiv(M, tm) * tm
    xq = x.reshape(M, C).astype(_COMPUTE_DTYPE)
    if Mp != M:
        xq = jnp.pad(xq, ((0, Mp - M), (0, 0)))
    kernel = functools.partial(_head1x1_kernel, n_valid=n_classes,
                               log_softmax=log_softmax)
    out = pl.pallas_call(
        kernel,
        out_shape=jax.ShapeDtypeStruct((Mp, Cp), jnp.float32),
        grid_spec=pltpu.PrefetchScalarGridSpec(
            num_scalar_prefetch=0,
            grid=(Mp // tm,),
            in_specs=[
                pl.BlockSpec((tm, C), lambda i: (i, 0)),
                pl.BlockSpec((C, Cp), lambda i: (0, 0)),
                pl.BlockSpec((1, Cp), lambda i: (0, 0)),
            ],
            out_specs=pl.BlockSpec((tm, Cp), lambda i: (i, 0)),
        ),
        compiler_params=_compiler_params(1),
    )(xq, wq, bq)
    return out[:M, :n_classes].reshape(N, H, W, n_classes)


# ---------------------------------------------------------------------------
# Parameters (deterministic synthetic init; shapes follow UNet_16.__init__)
# ---------------------------------------------------------------------------
def _conv_init(key, cin, cout, k=3):
    kw, kb = jax.random.split(key)
    fan_in = cin * k * k
    w = (jax.random.normal(kw, (k, k, cin, cout), jnp.float32)
         * (2.0 / fan_in) ** 0.5).astype(_COMPUTE_DTYPE)
    b = 0.01 * jax.random.normal(kb, (cout,), jnp.float32)
    return {"w": w, "b": b}


def init_unet16_params(key, num_classes, num_filters=32):
    nf = num_filters
    specs = [
        # VGG16 encoder 3x3 convs
        ("enc1_1", 3, 64), ("enc1_2", 64, 64),
        ("enc2_1", 64, 128), ("enc2_2", 128, 128),
        ("enc3_1", 128, 256), ("enc3_2", 256, 256), ("enc3_3", 256, 256),
        ("enc4_1", 256, 512), ("enc4_2", 512, 512), ("enc4_3", 512, 512),
        ("enc5_1", 512, 512), ("enc5_2", 512, 512), ("enc5_3", 512, 512),
        # decoder: Up_16(in, mid, out) = ConvRelu(in, mid) + Deconv(mid, out)
        ("bott_conv", 512, nf * 8 * 2), ("bott_deconv", nf * 8 * 2, nf * 8),
        ("up1_conv", 512 + nf * 8, nf * 8 * 2), ("up1_deconv", nf * 8 * 2, nf * 8),
        ("up2_conv", 512 + nf * 8, nf * 8 * 2), ("up2_deconv", nf * 8 * 2, nf * 8),
        ("up3_conv", 256 + nf * 8, nf * 4 * 2), ("up3_deconv", nf * 4 * 2, nf * 2),
        ("up4_conv", 128 + nf * 2, nf * 2 * 2), ("up4_deconv", nf * 2 * 2, nf),
        ("up5_conv", 64 + nf, nf),
    ]
    keys = jax.random.split(key, len(specs) + 1)
    params = {name: _conv_init(k, cin, cout)
              for k, (name, cin, cout) in zip(keys[:-1], specs)}
    params["out_conv"] = _conv_init(keys[-1], nf, num_classes, k=1)
    return params


# ---------------------------------------------------------------------------
# Forward pass (mirrors UNet_16.forward)
# ---------------------------------------------------------------------------
def unet16_forward(params, x_nchw, num_classes):
    x = jnp.transpose(x_nchw, (0, 2, 3, 1))  # NCHW -> NHWC

    def cw(name):
        return params[name]["w"], params[name]["b"]

    def enc(h, names, pool_first=False):
        h = conv3x3_relu(h, *cw(names[0]), pool_input=pool_first)
        for n in names[1:]:
            h = conv3x3_relu(h, *cw(n))
        return h

    def up(inputs, name, pool_first=False):  # Up_16 block
        h = conv3x3_relu(inputs, *cw(name + "_conv"), pool_input=pool_first)
        return conv_transpose3x3_s2_relu(h, *cw(name + "_deconv"))

    x1 = enc(x, ["enc1_1", "enc1_2"])
    x2 = enc(x1, ["enc2_1", "enc2_2"], pool_first=True)
    x3 = enc(x2, ["enc3_1", "enc3_2", "enc3_3"], pool_first=True)
    x4 = enc(x3, ["enc4_1", "enc4_2", "enc4_3"], pool_first=True)
    x5 = enc(x4, ["enc5_1", "enc5_2", "enc5_3"], pool_first=True)

    xb = up(x5, "bott", pool_first=True)                 # pool + bottleneck fused
    h = up([xb, x5], "up1")                              # skip concat fused in-kernel
    h = up([h, x4], "up2")
    h = up([h, x3], "up3")
    h = up([h, x2], "up4")
    h = conv3x3_relu([h, x1], *cw("up5_conv"))

    # F.log_softmax with no dim arg -> dim=1 (channels) in PyTorch.
    logits = output_conv1x1(h, params["out_conv"]["w"], params["out_conv"]["b"],
                            log_softmax=num_classes > 1)
    return jnp.transpose(logits, (0, 3, 1, 2))  # NHWC -> NCHW


# ---------------------------------------------------------------------------
# Numerical self-checks against XLA references (bf16-rounded inputs, generous tol)
# ---------------------------------------------------------------------------
def _q(a):
    return a.astype(_COMPUTE_DTYPE).astype(jnp.float32)


def _ref_conv3x3_relu(x, w, b):
    y = lax.conv_general_dilated(_q(x), _q(w), (1, 1), ((1, 1), (1, 1)),
                                 dimension_numbers=("NHWC", "HWIO", "NHWC"),
                                 precision=lax.Precision.HIGHEST)
    return jnp.maximum(y + b.reshape(1, 1, 1, -1), 0.0)


def _self_checks():
    k = jax.random.split(jax.random.PRNGKey(1), 10)

    # (a) conv with fused skip-concat (and the Cin-pad path: 3 + 16 channels).
    xa = jax.random.normal(k[0], (2, 8, 8, 3), jnp.float32)
    xb = jax.random.normal(k[1], (2, 8, 8, 16), jnp.float32)
    wc = 0.1 * jax.random.normal(k[2], (3, 3, 19, 16), jnp.float32)
    bc = 0.1 * jax.random.normal(k[3], (16,), jnp.float32)
    got = conv3x3_relu([xa, xb], wc, bc).astype(jnp.float32)
    want = _ref_conv3x3_relu(jnp.concatenate([xa, xb], axis=-1), wc, bc)
    assert bool(jnp.allclose(got, want, atol=5e-2, rtol=5e-2)), "conv concat check"

    # (b) conv with fused MaxPool2d(2).
    xp = jax.random.normal(k[4], (2, 8, 8, 16), jnp.float32)
    wp = 0.1 * jax.random.normal(k[5], (3, 3, 16, 32), jnp.float32)
    bp = 0.1 * jax.random.normal(k[6], (32,), jnp.float32)
    got = conv3x3_relu(xp, wp, bp, pool_input=True).astype(jnp.float32)
    pooled = lax.reduce_window(_q(xp), -jnp.inf, lax.max,
                               (1, 2, 2, 1), (1, 2, 2, 1), "VALID")
    want = _ref_conv3x3_relu(pooled, wp, bp)
    assert bool(jnp.allclose(got, want, atol=5e-2, rtol=5e-2)), "conv pool check"

    # (c) subpixel transposed conv vs. lhs-dilated correlation reference.
    xd = jax.random.normal(k[7], (1, 4, 4, 16), jnp.float32)
    wd = 0.1 * jax.random.normal(k[8], (3, 3, 16, 8), jnp.float32)
    bd = 0.1 * jax.random.normal(k[9], (8,), jnp.float32)
    got = conv_transpose3x3_s2_relu(xd, wd, bd).astype(jnp.float32)
    y = lax.conv_general_dilated(_q(xd), _q(wd), (1, 1), ((1, 2), (1, 2)),
                                 lhs_dilation=(2, 2),
                                 dimension_numbers=("NHWC", "HWIO", "NHWC"),
                                 precision=lax.Precision.HIGHEST)
    want = jnp.maximum(y + bd.reshape(1, 1, 1, -1), 0.0)
    assert got.shape == want.shape == (1, 8, 8, 8)
    assert bool(jnp.allclose(got, want, atol=5e-2, rtol=5e-2)), "deconv check"


# ---------------------------------------------------------------------------
if __name__ == "__main__":
    _self_checks()

    num_classes = 3
    key = jax.random.PRNGKey(0)
    kx, kp = jax.random.split(key)

    # 3-channel input; 32x32 so 5 pools reach 1x1 at the bottleneck; batch=2.
    x = jax.random.normal(kx, (2, 3, 32, 32), jnp.float32)  # NCHW, like PyTorch
    params = init_unet16_params(kp, num_classes=num_classes, num_filters=32)

    fwd = jax.jit(functools.partial(unet16_forward, num_classes=num_classes))
    out = fwd(params, x)
    jax.block_until_ready(out)

    assert out.shape == (2, num_classes, 32, 32), out.shape
    assert bool(jnp.all(jnp.isfinite(out)))
    print("KERNEL_OK")
</pallas_src>

<mosaic_0001>
module attributes {stable_mosaic.version = 11 : i64} {
  func.func @_conv3x3_kernel(%arg0: i32, %arg1: memref<1x8x8x8xbf16, #tpu.memory_space<vmem>>, %arg2: memref<1x8x8x16xbf16, #tpu.memory_space<vmem>>, %arg3: memref<72x16xbf16, #tpu.memory_space<vmem>>, %arg4: memref<144x16xbf16, #tpu.memory_space<vmem>>, %arg5: memref<1x16xf32, #tpu.memory_space<vmem>>, %arg6: memref<1x8x8x16xbf16, #tpu.memory_space<vmem>>) attributes {dimension_semantics = [#tpu.dimension_semantics<parallel>], iteration_bounds = array<i64: 2>, scalar_prefetch = 0 : i64, scratch_operands = 0 : i64, tpu.core_type = #tpu.core_type<tc>, window_params = [{transform_indices = @transform_0, window_bounds = array<i64: 1, 8, 8, 8>}, {transform_indices = @transform_1, window_bounds = array<i64: 1, 8, 8, 16>}, {pipeline_mode = #tpu.pipeline_mode<synchronous>, transform_indices = @transform_2, window_bounds = array<i64: 72, 16>}, {pipeline_mode = #tpu.pipeline_mode<synchronous>, transform_indices = @transform_3, window_bounds = array<i64: 144, 16>}, {pipeline_mode = #tpu.pipeline_mode<synchronous>, transform_indices = @transform_4, window_bounds = array<i64: 1, 16>}, {transform_indices = @transform_5, window_bounds = array<i64: 1, 8, 8, 16>}]} {
    %cst = arith.constant 0.000000e+00 : f32
    %0 = vector.broadcast %cst : f32 to vector<64x16xf32>
    %c0 = arith.constant 0 : index
    %c0_0 = arith.constant 0 : index
    %c0_1 = arith.constant 0 : index
    %c0_2 = arith.constant 0 : index
    %1 = vector.load %arg1[%c0, %c0_0, %c0_1, %c0_2] : memref<1x8x8x8xbf16, #tpu.memory_space<vmem>>, vector<1x8x8x8xbf16>
    %2 = vector.shape_cast %1 : vector<1x8x8x8xbf16> to vector<8x8x8xbf16>
    %cst_3 = arith.constant 0.000000e+00 : bf16
    %3 = vector.broadcast %cst_3 : bf16 to vector<1x8x8xbf16>
    %4 = tpu.concatenate %3, %2, %3 in 0 : vector<1x8x8xbf16>, vector<8x8x8xbf16>, vector<1x8x8xbf16> -> vector<10x8x8xbf16>
    %cst_4 = arith.constant 0.000000e+00 : bf16
    %5 = vector.broadcast %cst_4 : bf16 to vector<10x1x8xbf16>
    %6 = tpu.concatenate %5, %4, %5 in 1 : vector<10x1x8xbf16>, vector<10x8x8xbf16>, vector<10x1x8xbf16> -> vector<10x10x8xbf16>
    %7 = vector.extract_strided_slice %6 {offsets = [0, 0, 0], sizes = [8, 8, 8], strides = [1, 1, 1]} : vector<10x10x8xbf16> to vector<8x8x8xbf16>
    %8 = vector.extract_strided_slice %6 {offsets = [0, 1, 0], sizes = [8, 8, 8], strides = [1, 1, 1]} : vector<10x10x8xbf16> to vector<8x8x8xbf16>
    %9 = vector.extract_strided_slice %6 {offsets = [0, 2, 0], sizes = [8, 8, 8], strides = [1, 1, 1]} : vector<10x10x8xbf16> to vector<8x8x8xbf16>
    %10 = vector.extract_strided_slice %6 {offsets = [1, 0, 0], sizes = [8, 8, 8], strides = [1, 1, 1]} : vector<10x10x8xbf16> to vector<8x8x8xbf16>
    %11 = vector.extract_strided_slice %6 {offsets = [1, 1, 0], sizes = [8, 8, 8], strides = [1, 1, 1]} : vector<10x10x8xbf16> to vector<8x8x8xbf16>
    %12 = vector.extract_strided_slice %6 {offsets = [1, 2, 0], sizes = [8, 8, 8], strides = [1, 1, 1]} : vector<10x10x8xbf16> to vector<8x8x8xbf16>
    %13 = vector.extract_strided_slice %6 {offsets = [2, 0, 0], sizes = [8, 8, 8], strides = [1, 1, 1]} : vector<10x10x8xbf16> to vector<8x8x8xbf16>
    %14 = vector.extract_strided_slice %6 {offsets = [2, 1, 0], sizes = [8, 8, 8], strides = [1, 1, 1]} : vector<10x10x8xbf16> to vector<8x8x8xbf16>
    %15 = vector.extract_strided_slice %6 {offsets = [2, 2, 0], sizes = [8, 8, 8], strides = [1, 1, 1]} : vector<10x10x8xbf16> to vector<8x8x8xbf16>
    %16 = tpu.concatenate %7, %8, %9, %10, %11, %12, %13, %14, %15 in 2 : vector<8x8x8xbf16>, vector<8x8x8xbf16>, vector<8x8x8xbf16>, vector<8x8x8xbf16>, vector<8x8x8xbf16>, vector<8x8x8xbf16>, vector<8x8x8xbf16>, vector<8x8x8xbf16>, vector<8x8x8xbf16> -> vector<8x8x72xbf16>
    %17 = vector.shape_cast %16 : vector<8x8x72xbf16> to vector<64x72xbf16>
    %c0_5 = arith.constant 0 : index
    %c0_6 = arith.constant 0 : index
    %18 = vector.load %arg3[%c0_5, %c0_6] : memref<72x16xbf16, #tpu.memory_space<vmem>>, vector<72x16xbf16>
    %cst_7 = arith.constant dense<0.000000e+00> : vector<64x16xf32>
    %19 = tpu.matmul %17, %18, %cst_7 {dimension_numbers = #tpu.dot_dimension_numbers<[1], [0], [0], [1], [0, 0, 1, 1], [], []>} : vector<64x72xbf16>, vector<72x16xbf16>, vector<64x16xf32> -> vector<64x16xf32>
    %20 = arith.addf %0, %19 : vector<64x16xf32>
    %c0_8 = arith.constant 0 : index
    %c0_9 = arith.constant 0 : index
    %c0_10 = arith.constant 0 : index
    %c0_11 = arith.constant 0 : index
    %21 = vector.load %arg2[%c0_8, %c0_9, %c0_10, %c0_11] : memref<1x8x8x16xbf16, #tpu.memory_space<vmem>>, vector<1x8x8x16xbf16>
    %22 = vector.shape_cast %21 : vector<1x8x8x16xbf16> to vector<8x8x16xbf16>
    %cst_12 = arith.constant 0.000000e+00 : bf16
    %23 = vector.broadcast %cst_12 : bf16 to vector<1x8x16xbf16>
    %24 = tpu.concatenate %23, %22, %23 in 0 : vector<1x8x16xbf16>, vector<8x8x16xbf16>, vector<1x8x16xbf16> -> vector<10x8x16xbf16>
    %cst_13 = arith.constant 0.000000e+00 : bf16
    %25 = vector.broadcast %cst_13 : bf16 to vector<10x1x16xbf16>
    %26 = tpu.concatenate %25, %24, %25 in 1 : vector<10x1x16xbf16>, vector<10x8x16xbf16>, vector<10x1x16xbf16> -> vector<10x10x16xbf16>
    %27 = vector.extract_strided_slice %26 {offsets = [0, 0, 0], sizes = [8, 8, 16], strides = [1, 1, 1]} : vector<10x10x16xbf16> to vector<8x8x16xbf16>
    %28 = vector.extract_strided_slice %26 {offsets = [0, 1, 0], sizes = [8, 8, 16], strides = [1, 1, 1]} : vector<10x10x16xbf16> to vector<8x8x16xbf16>
    %29 = vector.extract_strided_slice %26 {offsets = [0, 2, 0], sizes = [8, 8, 16], strides = [1, 1, 1]} : vector<10x10x16xbf16> to vector<8x8x16xbf16>
    %30 = vector.extract_strided_slice %26 {offsets = [1, 0, 0], sizes = [8, 8, 16], strides = [1, 1, 1]} : vector<10x10x16xbf16> to vector<8x8x16xbf16>
    %31 = vector.extract_strided_slice %26 {offsets = [1, 1, 0], sizes = [8, 8, 16], strides = [1, 1, 1]} : vector<10x10x16xbf16> to vector<8x8x16xbf16>
    %32 = vector.extract_strided_slice %26 {offsets = [1, 2, 0], sizes = [8, 8, 16], strides = [1, 1, 1]} : vector<10x10x16xbf16> to vector<8x8x16xbf16>
    %33 = vector.extract_strided_slice %26 {offsets = [2, 0, 0], sizes = [8, 8, 16], strides = [1, 1, 1]} : vector<10x10x16xbf16> to vector<8x8x16xbf16>
    %34 = vector.extract_strided_slice %26 {offsets = [2, 1, 0], sizes = [8, 8, 16], strides = [1, 1, 1]} : vector<10x10x16xbf16> to vector<8x8x16xbf16>
    %35 = vector.extract_strided_slice %26 {offsets = [2, 2, 0], sizes = [8, 8, 16], strides = [1, 1, 1]} : vector<10x10x16xbf16> to vector<8x8x16xbf16>
    %36 = tpu.concatenate %27, %28, %29, %30, %31, %32, %33, %34, %35 in 2 : vector<8x8x16xbf16>, vector<8x8x16xbf16>, vector<8x8x16xbf16>, vector<8x8x16xbf16>, vector<8x8x16xbf16>, vector<8x8x16xbf16>, vector<8x8x16xbf16>, vector<8x8x16xbf16>, vector<8x8x16xbf16> -> vector<8x8x144xbf16>
    %37 = vector.shape_cast %36 : vector<8x8x144xbf16> to vector<64x144xbf16>
    %c0_14 = arith.constant 0 : index
    %c0_15 = arith.constant 0 : index
    %38 = vector.load %arg4[%c0_14, %c0_15] : memref<144x16xbf16, #tpu.memory_space<vmem>>, vector<144x16xbf16>
    %cst_16 = arith.constant dense<0.000000e+00> : vector<64x16xf32>
    %39 = tpu.matmul %37, %38, %cst_16 {dimension_numbers = #tpu.dot_dimension_numbers<[1], [0], [0], [1], [0, 0, 1, 1], [], []>} : vector<64x144xbf16>, vector<144x16xbf16>, vector<64x16xf32> -> vector<64x16xf32>
    %40 = arith.addf %20, %39 : vector<64x16xf32>
    %c0_17 = arith.constant 0 : index
    %c0_18 = arith.constant 0 : index
    %41 = vector.load %arg5[%c0_17, %c0_18] : memref<1x16xf32, #tpu.memory_space<vmem>>, vector<1x16xf32>
    %42 = vector.broadcast %41 : vector<1x16xf32> to vector<64x16xf32>
    %43 = arith.addf %40, %42 : vector<64x16xf32>
    %cst_19 = arith.constant 0.000000e+00 : f32
    %44 = vector.broadcast %cst_19 : f32 to vector<64x16xf32>
    %45 = arith.maximumf %43, %44 : vector<64x16xf32>
    %46 = vector.shape_cast %45 : vector<64x16xf32> to vector<1x8x8x16xf32>
    %47 = arith.truncf %46 : vector<1x8x8x16xf32> to vector<1x8x8x16xbf16>
    %c0_20 = arith.constant 0 : index
    %c0_21 = arith.constant 0 : index
    %c0_22 = arith.constant 0 : index
    %c0_23 = arith.constant 0 : index
    %48 = vector.load %arg6[%c0_20, %c0_21, %c0_22, %c0_23] : memref<1x8x8x16xbf16, #tpu.memory_space<vmem>>, vector<1x8x8x16xbf16>
    tpu.vector_store %arg6[%c0_20, %c0_21, %c0_22, %c0_23], %47 {strides = array<i32>} : memref<1x8x8x16xbf16, #tpu.memory_space<vmem>>, vector<1x8x8x16xbf16>,
    return
  }
  func.func @transform_0(%arg0: i32) -> (i32, i32, i32, i32) {
    %c0_i32 = arith.constant 0 : i32
    %c0_i32_0 = arith.constant 0 : i32
    %c0_i32_1 = arith.constant 0 : i32
    %c0_i32_2 = arith.constant 0 : i32
    return %arg0, %c0_i32, %c0_i32_0, %c0_i32_1 : i32, i32, i32, i32
  }
  func.func @transform_1(%arg0: i32) -> (i32, i32, i32, i32) {
    %c0_i32 = arith.constant 0 : i32
    %c0_i32_0 = arith.constant 0 : i32
    %c0_i32_1 = arith.constant 0 : i32
    %c0_i32_2 = arith.constant 0 : i32
    return %arg0, %c0_i32, %c0_i32_0, %c0_i32_1 : i32, i32, i32, i32
  }
  func.func @transform_2(%arg0: i32) -> (i32, i32) {
    %c0_i32 = arith.constant 0 : i32
    %c0_i32_0 = arith.constant 0 : i32
    %c0_i32_1 = arith.constant 0 : i32
    return %c0_i32, %c0_i32_0 : i32, i32
  }
  func.func @transform_3(%arg0: i32) -> (i32, i32) {
    %c0_i32 = arith.constant 0 : i32
    %c0_i32_0 = arith.constant 0 : i32
    %c0_i32_1 = arith.constant 0 : i32
    return %c0_i32, %c0_i32_0 : i32, i32
  }
  func.func @transform_4(%arg0: i32) -> (i32, i32) {
    %c0_i32 = arith.constant 0 : i32
    %c0_i32_0 = arith.constant 0 : i32
    %c0_i32_1 = arith.constant 0 : i32
    return %c0_i32, %c0_i32_0 : i32, i32
  }
  func.func @transform_5(%arg0: i32) -> (i32, i32, i32, i32) {
    %c0_i32 = arith.constant 0 : i32
    %c0_i32_0 = arith.constant 0 : i32
    %c0_i32_1 = arith.constant 0 : i32
    %c0_i32_2 = arith.constant 0 : i32
    return %arg0, %c0_i32, %c0_i32_0, %c0_i32_1 : i32, i32, i32, i32
  }
}

</mosaic_0001>

<llo_original>
// kernel: tpu_custom_call.1
$region0: #{tpu_custom_call.1}
  #allocation0 [shape = 'u32[]', space=smem, size = 0x4, offset = 0x4, fixed_abs, tag = 'smem constant byte address 0x4 - core index']
  #allocation1 [shape = 'u32[144,128]{1,0:T(1,128)}', space=vmem, size = 0x12000, scoped, tag = 'internal scratch']
  %s0 = inlined_call_operand.vmem [shape: bf16[2,8,8,8], index: 0, kind: input, shape index: {}]
  %s1 = inlined_call_operand.vmem [shape: bf16[2,8,8,16], index: 1, kind: input, shape index: {}]
  %s2 = inlined_call_operand.vmem [shape: bf16[72,16], index: 2, kind: input, shape index: {}]
  %s3 = inlined_call_operand.vmem [shape: bf16[144,16], index: 3, kind: input, shape index: {}]
  %s4 = inlined_call_operand.vmem [shape: f32[1,16], index: 4, kind: input, shape index: {}]
  %s5 = inlined_call_operand.hbm [shape: bf16[2,8,8,16], index: 5, kind: output, shape index: {}]
  %s6 = sld [smem:[#allocation0]]
  $region53: #{tpu_custom_call.1} parent=0
    _
  %s8 = ssub.s32 1, %s6
  %s9 = scalar_select 0, %s8, %s6
  $region1: #{tpu_custom_call.1} parent=0
    #allocation2 [shape = 'u8[32768]{0}', space=vmem, size = 0x8000, scoped, tag = 'output window, operand 0']
    #allocation3 [shape = 's32[2]{0}', space=sflag, size = 0x8, scoped, tag = 'scoped memory for tpu_custom_call.1']
    %10 = vsyncpa [#allocation3], 0
    %s11 = scalar_lea.sflag [#allocation3], 1
    %12 = vsyncpa %s11, 0
    loop: start=0, step=1, limit=4
    $region2: #{tpu_custom_call.1} parent=1 // loop_pre_header
      _
    $region3: #{tpu_custom_call.1} parent=1 // loop_header
      %s14 = sphi 0, %s18
      %p15 = scmp.ge.s32.totalorder %s14, 4
      %s24 = sphi 0, %s26
      %s27 = sphi 0, %s24
      %s28 = sphi 0, %s27
      %s44 = sphi 0, %s28
      %s50 = sphi 0, %s52
      %s53 = sphi 0, %s50
      %s54 = sphi 0, %s53
      %s70 = sphi 0, %s54
      %s74 = sphi 0, %s74
      %s76 = sphi 0, %s74
      %s77 = sphi 0, %s76
      %s91 = sphi 0, %s77
      %s95 = sphi 0, %s95
      %s97 = sphi 0, %s95
      %s98 = sphi 0, %s97
      %s112 = sphi 0, %s98
      %s116 = sphi 0, %s116
      %s118 = sphi 0, %s116
      %s119 = sphi 0, %s118
      %s133 = sphi 0, %s119
      %s139 = sphi 0, %s141
      %s142 = sphi 0, %s139
      %s143 = sphi 0, %s142
      %s159 = sphi 0, %s143
    $region4: #{tpu_custom_call.1} parent=1 // loop_header_branch
      %17 = sbr.rel (%p15) target = $region8
    $region5: #{tpu_custom_call.1} parent=1 // loop_body
      %s19 = ssub.s32 %s14, 1
      %s20 = ssub.s32 %s14, 2
      %s21 = sadd.s32 %s14, 1
      %s22 = ssub.s32 %s14, %s21
      %p23 = scmp.eq.s32.totalorder %s22, 0
      %s25 = sadd.s32 %s24, 1
      %s26 = scalar_select %p23, %s24, %s25
      %p29 = pneg %p23
      %p30 = scmp.eq.s32.totalorder %s14, 1
      %p31 = por %p29, %p30
      %p32 = scmp.ne.s32.totalorder %s24, %s27
      %p33 = scmp.eq.s32.totalorder %s14, 0
      %p34 = por %p32, %p33
      %p35 = scmp.ne.s32.totalorder %s24, %s27
      %p36 = scmp.eq.s32.totalorder %s19, 1
      %p37 = por %p35, %p36
      %p38 = scmp.ne.s32.totalorder %s27, %s28
      %p39 = scmp.eq.s32.totalorder %s19, 0
      %p40 = por %p38, %p39
      %p41 = scmp.ne.s32.totalorder %s27, %s28
      %p42 = scmp.eq.s32.totalorder %s20, 1
      %p43 = por %p41, %p42
      %p45 = scmp.ne.s32.totalorder %s28, %s44
      %p46 = scmp.eq.s32.totalorder %s20, 0
      %p47 = por %p45, %p46
      %s48 = ssub.s32 %s14, %s21
      %p49 = scmp.eq.s32.totalorder %s48, 0
      %s51 = sadd.s32 %s50, 1
      %s52 = scalar_select %p49, %s50, %s51
      %p55 = pneg %p49
      %p56 = scmp.eq.s32.totalorder %s14, 1
      %p57 = por %p55, %p56
      %p58 = scmp.ne.s32.totalorder %s50, %s53
      %p59 = scmp.eq.s32.totalorder %s14, 0
      %p60 = por %p58, %p59
      %p61 = scmp.ne.s32.totalorder %s50, %s53
      %p62 = scmp.eq.s32.totalorder %s19, 1
      %p63 = por %p61, %p62
      %p64 = scmp.ne.s32.totalorder %s53, %s54
      %p65 = scmp.eq.s32.totalorder %s19, 0
      %p66 = por %p64, %p65
      %p67 = scmp.ne.s32.totalorder %s53, %s54
      %p68 = scmp.eq.s32.totalorder %s20, 1
      %p69 = por %p67, %p68
      %p71 = scmp.ne.s32.totalorder %s54, %s70
      %p72 = scmp.eq.s32.totalorder %s20, 0
      %p73 = por %p71, %p72
      %s75 = sadd.s32 %s74, 1
      %p78 = scmp.eq.s32.totalorder %s14, 1
      %p79 = scmp.ne.s32.totalorder %s74, %s76
      %p80 = scmp.eq.s32.totalorder %s14, 0
      %p81 = por %p79, %p80
      %p82 = scmp.ne.s32.totalorder %s74, %s76
      %p83 = scmp.eq.s32.totalorder %s19, 1
      %p84 = por %p82, %p83
      %p85 = scmp.ne.s32.totalorder %s76, %s77
      %p86 = scmp.eq.s32.totalorder %s19, 0
      %p87 = por %p85, %p86
      %p88 = scmp.ne.s32.totalorder %s76, %s77
      %p89 = scmp.eq.s32.totalorder %s20, 1
      %p90 = por %p88, %p89
      %p92 = scmp.ne.s32.totalorder %s77, %s91
      %p93 = scmp.eq.s32.totalorder %s20, 0
      %p94 = por %p92, %p93
      %s96 = sadd.s32 %s95, 1
      %p99 = scmp.eq.s32.totalorder %s14, 1
      %p100 = scmp.ne.s32.totalorder %s95, %s97
      %p101 = scmp.eq.s32.totalorder %s14, 0
      %p102 = por %p100, %p101
      %p103 = scmp.ne.s32.totalorder %s95, %s97
      %p104 = scmp.eq.s32.totalorder %s19, 1
      %p105 = por %p103, %p104
      %p106 = scmp.ne.s32.totalorder %s97, %s98
      %p107 = scmp.eq.s32.totalorder %s19, 0
      %p108 = por %p106, %p107
      %p109 = scmp.ne.s32.totalorder %s97, %s98
      %p110 = scmp.eq.s32.totalorder %s20, 1
      %p111 = por %p109, %p110
      %p113 = scmp.ne.s32.totalorder %s98, %s112
      %p114 = scmp.eq.s32.totalorder %s20, 0
      %p115 = por %p113, %p114
      %s117 = sadd.s32 %s116, 1
      %p120 = scmp.eq.s32.totalorder %s14, 1
      %p121 = scmp.ne.s32.totalorder %s116, %s118
      %p122 = scmp.eq.s32.totalorder %s14, 0
      %p123 = por %p121, %p122
      %p124 = scmp.ne.s32.totalorder %s116, %s118
      %p125 = scmp.eq.s32.totalorder %s19, 1
      %p126 = por %p124, %p125
      %p127 = scmp.ne.s32.totalorder %s118, %s119
      %p128 = scmp.eq.s32.totalorder %s19, 0
      %p129 = por %p127, %p128
      %p130 = scmp.ne.s32.totalorder %s118, %s119
      %p131 = scmp.eq.s32.totalorder %s20, 1
      %p132 = por %p130, %p131
      %p134 = scmp.ne.s32.totalorder %s119, %s133
      %p135 = scmp.eq.s32.totalorder %s20, 0
      %p136 = por %p134, %p135
      %s137 = ssub.s32 %s14, %s21
      %p138 = scmp.eq.s32.totalorder %s137, 0
      %s140 = sadd.s32 %s139, 1
      %s141 = scalar_select %p138, %s139, %s140
      %p144 = pneg %p138
      %p145 = scmp.eq.s32.totalorder %s14, 1
      %p146 = por %p144, %p145
      %p147 = scmp.ne.s32.totalorder %s139, %s142
      %p148 = scmp.eq.s32.totalorder %s14, 0
      %p149 = por %p147, %p148
      %p150 = scmp.ne.s32.totalorder %s139, %s142
      %p151 = scmp.eq.s32.totalorder %s19, 1
      %p152 = por %p150, %p151
      %p153 = scmp.ne.s32.totalorder %s142, %s143
      %p154 = scmp.eq.s32.totalorder %s19, 0
      %p155 = por %p153, %p154
      %p156 = scmp.ne.s32.totalorder %s142, %s143
      %p157 = scmp.eq.s32.totalorder %s20, 1
      %p158 = por %p156, %p157
      %p160 = scmp.ne.s32.totalorder %s143, %s159
      %p161 = scmp.eq.s32.totalorder %s20, 0
      %p162 = por %p160, %p161
      %p163 = scmp.le.s32.totalorder 1, %s14
      %p164 = scmp.lt.s32.totalorder %s14, 3
      %p165 = pnand %p163, %p164
      %p166 = pneg %p165
      // Predicated region
      $region9: #{tpu_custom_call.1} parent=5 // pred_check
        _
      $region10: #{tpu_custom_call.1} parent=5 // pred_check_branch
        %168 = sbr.rel (%p165) target = $region12
      $region11: #{tpu_custom_call.1} parent=5 // pred_region
        %s169 = ssub.s32 %s14, 1
        // Predicated region
        $region13: #{tpu_custom_call.1} parent=11 // pred_check
          %p170 = pneg %p87
        $region14: #{tpu_custom_call.1} parent=11 // pred_check_branch
          %172 = sbr.rel (%p170) target = $region16
        $region15: #{tpu_custom_call.1} parent=11 // pred_region
          _
        $region16: #{tpu_custom_call.1} parent=11 // pred_fallthru
          _
        // Predicated region
        $region17: #{tpu_custom_call.1} parent=11 // pred_check
          %p173 = pneg %p108
        $region18: #{tpu_custom_call.1} parent=11 // pred_check_branch
          %175 = sbr.rel (%p173) target = $region20
        $region19: #{tpu_custom_call.1} parent=11 // pred_region
          _
        $region20: #{tpu_custom_call.1} parent=11 // pred_fallthru
          _
        // Predicated region
        $region21: #{tpu_custom_call.1} parent=11 // pred_check
          %p176 = pneg %p129
        $region22: #{tpu_custom_call.1} parent=11 // pred_check_branch
          %178 = sbr.rel (%p176) target = $region24
        $region23: #{tpu_custom_call.1} parent=11 // pred_region
          _
        $region24: #{tpu_custom_call.1} parent=11 // pred_fallthru
          _
      $region12: #{tpu_custom_call.1} parent=5 // pred_fallthru
        _
      %p179 = scmp.lt.s32.totalorder %s14, 2
      // Predicated region
      $region25: #{tpu_custom_call.1} parent=5 // pred_check
        %p180 = pneg %p179
      $region26: #{tpu_custom_call.1} parent=5 // pred_check_branch
        %182 = sbr.rel (%p180) target = $region28
      $region27: #{tpu_custom_call.1} parent=5 // pred_region
        // Predicated region
        $region29: #{tpu_custom_call.1} parent=27 // pred_check
          %p183 = pneg %p34
        $region30: #{tpu_custom_call.1} parent=27 // pred_check_branch
          %185 = sbr.rel (%p183) target = $region32
        $region31: #{tpu_custom_call.1} parent=27 // pred_region
          %p186 = scmp.lt.s32.totalorder %s14, 1
          %s187 = scalar_select %p186, %s14, 1
          %s188 = smul.addr %s187, 8
          %s189 = smul.addr %s188, 4
          %s190 = scalar_lea.vmem %s0, %s189
        $region32: #{tpu_custom_call.1} parent=27 // pred_fallthru
          _
        // Predicated region
        $region33: #{tpu_custom_call.1} parent=27 // pred_check
          %p191 = pneg %p60
        $region34: #{tpu_custom_call.1} parent=27 // pred_check_branch
          %193 = sbr.rel (%p191) target = $region36
        $region35: #{tpu_custom_call.1} parent=27 // pred_region
          %p194 = scmp.lt.s32.totalorder %s14, 1
          %s195 = scalar_select %p194, %s14, 1
          %s196 = smul.addr %s195, 8
          %s197 = smul.addr %s196, 4
          %s198 = scalar_lea.vmem %s1, %s197
        $region36: #{tpu_custom_call.1} parent=27 // pred_fallthru
          _
      $region28: #{tpu_custom_call.1} parent=5 // pred_fallthru
        _
      %p199 = scmp.le.s32.totalorder 1, %s14
      %p200 = scmp.lt.s32.totalorder %s14, 3
      %p201 = pnand %p199, %p200
      %p202 = pneg %p201
      // Predicated region
      $region37: #{tpu_custom_call.1} parent=5 // pred_check
        _
      $region38: #{tpu_custom_call.1} parent=5 // pred_check_branch
        %204 = sbr.rel (%p201) target = $region40
      $region39: #{tpu_custom_call.1} parent=5 // pred_region
        %s205 = ssub.s32 %s14, 1
        %p206 = scmp.lt.s32.totalorder %s19, 1
        %s207 = scalar_select %p206, %s19, 1
        %s208 = smul.addr %s207, 8
        %s209 = smul.addr %s208, 4
        %s210 = scalar_lea.vmem %s0, %s209
        %p211 = pneg %p40
        %p212 = pneg %p37
        %p213 = scmp.lt.s32.totalorder %s19, 1
        %s214 = scalar_select %p213, %s19, 1
        %s215 = smul.addr %s214, 8
        %s216 = smul.addr %s215, 4
        %s217 = scalar_lea.vmem %s1, %s216
        %p218 = pneg %p66
        %p219 = pneg %p63
        %p220 = pneg %p87
        %p221 = pneg %p84
        %p222 = pneg %p108
        %p223 = pneg %p105
        %p224 = pneg %p129
        %p225 = pneg %p126
        %p226 = pneg %p155
        %p227 = pneg %p152
        %s228 = sand.u32 %s142, 1
        %s229 = scalar_lea.sflag [#allocation3], %s228
        %s230 = sand.u32 %s142, 1
        %s231 = smul.addr %s230, 32
        %s232 = scalar_lea.vmem [#allocation2], %s231
        %p233 = scmp.lt.s32.totalorder %s19, 1
        %s234 = scalar_select %p233, %s19, 1
        %s235 = smul.addr %s234, 8
        %s236 = smul.addr %s235, 4
        %s237 = scalar_lea.vmem %s0, %s236
        %p238 = scmp.lt.s32.totalorder %s19, 1
        %s239 = scalar_select %p238, %s19, 1
        %s240 = smul.addr %s239, 8
        %s241 = smul.addr %s240, 4
        %s242 = scalar_lea.vmem %s1, %s241
        %v244 = vld [vmem:[%s237] sm:$0xf]
        %v245 = vld [vmem:[%s237 + $0x4] sm:$0xf]
        %v246 = vld [vmem:[%s237 + $0x8] sm:$0xf]
        %v247 = vld [vmem:[%s237 + $0xc] sm:$0xf]
        %v248 = vld [vmem:[%s237 + $0x10] sm:$0xf]
        %v249 = vld [vmem:[%s237 + $0x14] sm:$0xf]
        %v250 = vld [vmem:[%s237 + $0x18] sm:$0xf]
        %v251 = vld [vmem:[%s237 + $0x1c] sm:$0xf]
        %v253 = vshrl.u32 0, 16
        %v255 = vrot.slane %v253, 7
        %v256 = vshll.u32 0, 16
        %v258 = vor.u32 %v255, %v256
        %v260 = vshrl.u32 %v244, 16
        %v262 = vrot.slane %v260, 7
        %v263 = vshll.u32 %v244, 16
        %v265 = vor.u32 %v262, %v263
        %v267 = vshrl.u32 %v245, 16
        %v269 = vrot.slane %v267, 7
        %v270 = vshll.u32 %v245, 16
        %v272 = vor.u32 %v269, %v270
        %v274 = vshrl.u32 %v246, 16
        %v276 = vrot.slane %v274, 7
        %v277 = vshll.u32 %v246, 16
        %v279 = vor.u32 %v276, %v277
        %v281 = vshrl.u32 %v247, 16
        %v283 = vrot.slane %v281, 7
        %v284 = vshll.u32 %v247, 16
        %v286 = vor.u32 %v283, %v284
        %v288 = vshrl.u32 %v248, 16
        %v290 = vrot.slane %v288, 7
        %v291 = vshll.u32 %v248, 16
        %v293 = vor.u32 %v290, %v291
        %v295 = vshrl.u32 %v249, 16
        %v297 = vrot.slane %v295, 7
        %v298 = vshll.u32 %v249, 16
        %v300 = vor.u32 %v297, %v298
        %v302 = vshrl.u32 %v250, 16
        %v304 = vrot.slane %v302, 7
        %v305 = vshll.u32 %v250, 16
        %v307 = vor.u32 %v304, %v305
        %v309 = vshrl.u32 %v251, 16
        %v311 = vrot.slane %v309, 7
        %v312 = vshll.u32 %v251, 16
        %v314 = vor.u32 %v311, %v312
        %vm324 = vcmask 1040384
        %vm325 = vsmask.f32 256
        %vm326 = vmand %vm324, %vm325
        %v327 = vsel %vm326, 0, %v258
        %v328 = vsel %vm326, 0, %v265
        %v329 = vsel %vm326, 0, %v272
        %v330 = vsel %vm326, 0, %v279
        %v331 = vsel %vm326, 0, %v286
        %v332 = vsel %vm326, 0, %v293
        %v333 = vsel %vm326, 0, %v300
        %v334 = vsel %vm326, 0, %v307
        %v335 = vsel %vm326, 0, %v314
        %vm336 = vcmask 1044480
        %vm337 = vsmask.f32 4352
        %vm338 = vmand %vm336, %vm337
        %v339 = vsel %vm338, %v327, 0
        %v340 = vsel %vm338, %v328, 0
        %v341 = vsel %vm338, %v329, 0
        %v342 = vsel %vm338, %v330, 0
        %v343 = vsel %vm338, %v331, 0
        %v344 = vsel %vm338, %v332, 0
        %v345 = vsel %vm338, %v333, 0
        %v346 = vsel %vm338, %v334, 0
        %v347 = vsel %vm338, %v335, 0
        %v349 = vshrl.u32 %v339, 16
        %v351 = vshll.u32 %v339, 16
        %v353 = vrot.slane %v351, 1
        %v354 = vor.u32 %v349, %v353
        %v356 = vshrl.u32 %v340, 16
        %v358 = vshll.u32 %v340, 16
        %v360 = vrot.slane %v358, 1
        %v361 = vor.u32 %v356, %v360
        %v363 = vshrl.u32 %v341, 16
        %v365 = vshll.u32 %v341, 16
        %v367 = vrot.slane %v365, 1
        %v368 = vor.u32 %v363, %v367
        %v370 = vshrl.u32 %v342, 16
        %v372 = vshll.u32 %v342, 16
        %v374 = vrot.slane %v372, 1
        %v375 = vor.u32 %v370, %v374
        %v377 = vshrl.u32 %v343, 16
        %v379 = vshll.u32 %v343, 16
        %v381 = vrot.slane %v379, 1
        %v382 = vor.u32 %v377, %v381
        %v384 = vshrl.u32 %v344, 16
        %v386 = vshll.u32 %v344, 16
        %v388 = vrot.slane %v386, 1
        %v389 = vor.u32 %v384, %v388
        %v391 = vshrl.u32 %v345, 16
        %v393 = vshll.u32 %v345, 16
        %v395 = vrot.slane %v393, 1
        %v396 = vor.u32 %v391, %v395
        %v398 = vshrl.u32 %v346, 16
        %v400 = vshll.u32 %v346, 16
        %v402 = vrot.slane %v400, 1
        %v403 = vor.u32 %v398, %v402
        %404 = vrot.lane.b32.xlu0 %v354, 8
        %v405 = vpop.permute.xlu0 %404
        %406 = vrot.lane.b32.xlu0 %v361, 8
        %v407 = vpop.permute.xlu0 %406
        %408 = vrot.lane.b32.xlu0 %v368, 8
        %v409 = vpop.permute.xlu0 %408
        %410 = vrot.lane.b32.xlu0 %v375, 8
        %v411 = vpop.permute.xlu0 %410
        %412 = vrot.lane.b32.xlu0 %v382, 8
        %v413 = vpop.permute.xlu0 %412
        %414 = vrot.lane.b32.xlu0 %v389, 8
        %v415 = vpop.permute.xlu0 %414
        %416 = vrot.lane.b32.xlu0 %v396, 8
        %v417 = vpop.permute.xlu0 %416
        %418 = vrot.lane.b32.xlu0 %v403, 8
        %v419 = vpop.permute.xlu0 %418
        %v428 = vrot.slane %v339, 1
        %v429 = vrot.slane %v340, 1
        %v430 = vrot.slane %v341, 1
        %v431 = vrot.slane %v342, 1
        %v432 = vrot.slane %v343, 1
        %v433 = vrot.slane %v344, 1
        %v434 = vrot.slane %v345, 1
        %v435 = vrot.slane %v346, 1
        %436 = vrot.lane.b32.xlu0 %v428, 16
        %v437 = vpop.permute.xlu0 %436
        %438 = vrot.lane.b32.xlu0 %v429, 16
        %v439 = vpop.permute.xlu0 %438
        %440 = vrot.lane.b32.xlu0 %v430, 16
        %v441 = vpop.permute.xlu0 %440
        %442 = vrot.lane.b32.xlu0 %v431, 16
        %v443 = vpop.permute.xlu0 %442
        %444 = vrot.lane.b32.xlu0 %v432, 16
        %v445 = vpop.permute.xlu0 %444
        %446 = vrot.lane.b32.xlu0 %v433, 16
        %v447 = vpop.permute.xlu0 %446
        %448 = vrot.lane.b32.xlu0 %v434, 16
        %v449 = vpop.permute.xlu0 %448
        %450 = vrot.lane.b32.xlu0 %v435, 16
        %v451 = vpop.permute.xlu0 %450
        %453 = vrot.lane.b32.xlu0 %v340, 24
        %v454 = vpop.permute.xlu0 %453
        %455 = vrot.lane.b32.xlu0 %v341, 24
        %v456 = vpop.permute.xlu0 %455
        %457 = vrot.lane.b32.xlu0 %v342, 24
        %v458 = vpop.permute.xlu0 %457
        %459 = vrot.lane.b32.xlu0 %v343, 24
        %v460 = vpop.permute.xlu0 %459
        %461 = vrot.lane.b32.xlu0 %v344, 24
        %v462 = vpop.permute.xlu0 %461
        %463 = vrot.lane.b32.xlu0 %v345, 24
        %v464 = vpop.permute.xlu0 %463
        %465 = vrot.lane.b32.xlu0 %v346, 24
        %v466 = vpop.permute.xlu0 %465
        %467 = vrot.lane.b32.xlu0 %v347, 24
        %v468 = vpop.permute.xlu0 %467
        %v470 = vshrl.u32 %v347, 16
        %v472 = vshll.u32 %v347, 16
        %v474 = vrot.slane %v472, 1
        %v475 = vor.u32 %v470, %v474
        %476 = vrot.lane.b32.xlu0 %v361, 32
        %v477 = vpop.permute.xlu0 %476
        %478 = vrot.lane.b32.xlu0 %v368, 32
        %v479 = vpop.permute.xlu0 %478
        %480 = vrot.lane.b32.xlu0 %v375, 32
        %v481 = vpop.permute.xlu0 %480
        %482 = vrot.lane.b32.xlu0 %v382, 32
        %v483 = vpop.permute.xlu0 %482
        %484 = vrot.lane.b32.xlu0 %v389, 32
        %v485 = vpop.permute.xlu0 %484
        %486 = vrot.lane.b32.xlu0 %v396, 32
        %v487 = vpop.permute.xlu0 %486
        %488 = vrot.lane.b32.xlu0 %v403, 32
        %v489 = vpop.permute.xlu0 %488
        %490 = vrot.lane.b32.xlu0 %v475, 32
        %v491 = vpop.permute.xlu0 %490
        %v492 = vrot.slane %v347, 1
        %493 = vrot.lane.b32.xlu0 %v429, 40
        %v494 = vpop.permute.xlu0 %493
        %495 = vrot.lane.b32.xlu0 %v430, 40
        %v496 = vpop.permute.xlu0 %495
        %497 = vrot.lane.b32.xlu0 %v431, 40
        %v498 = vpop.permute.xlu0 %497
        %499 = vrot.lane.b32.xlu0 %v432, 40
        %v500 = vpop.permute.xlu0 %499
        %501 = vrot.lane.b32.xlu0 %v433, 40
        %v502 = vpop.permute.xlu0 %501
        %503 = vrot.lane.b32.xlu0 %v434, 40
        %v504 = vpop.permute.xlu0 %503
        %505 = vrot.lane.b32.xlu0 %v435, 40
        %v506 = vpop.permute.xlu0 %505
        %507 = vrot.lane.b32.xlu0 %v492, 40
        %v508 = vpop.permute.xlu0 %507
        %509 = vrot.lane.b32.xlu0 %v341, 48
        %v510 = vpop.permute.xlu0 %509
        %511 = vrot.lane.b32.xlu0 %v342, 48
        %v512 = vpop.permute.xlu0 %511
        %513 = vrot.lane.b32.xlu0 %v343, 48
        %v514 = vpop.permute.xlu0 %513
        %515 = vrot.lane.b32.xlu0 %v344, 48
        %v516 = vpop.permute.xlu0 %515
        %517 = vrot.lane.b32.xlu0 %v345, 48
        %v518 = vpop.permute.xlu0 %517
        %519 = vrot.lane.b32.xlu0 %v346, 48
        %v520 = vpop.permute.xlu0 %519
        %521 = vrot.lane.b32.xlu0 %v347, 48
        %v522 = vpop.permute.xlu0 %521
        %523 = vrot.lane.b32.xlu0 %v339, 48
        %v524 = vpop.permute.xlu0 %523
        %525 = vrot.lane.b32.xlu0 %v368, 56
        %v526 = vpop.permute.xlu0 %525
        %527 = vrot.lane.b32.xlu0 %v375, 56
        %v528 = vpop.permute.xlu0 %527
        %529 = vrot.lane.b32.xlu0 %v382, 56
        %v530 = vpop.permute.xlu0 %529
        %531 = vrot.lane.b32.xlu0 %v389, 56
        %v532 = vpop.permute.xlu0 %531
        %533 = vrot.lane.b32.xlu0 %v396, 56
        %v534 = vpop.permute.xlu0 %533
        %535 = vrot.lane.b32.xlu0 %v403, 56
        %v536 = vpop.permute.xlu0 %535
        %537 = vrot.lane.b32.xlu0 %v475, 56
        %v538 = vpop.permute.xlu0 %537
        %539 = vrot.lane.b32.xlu0 %v354, 56
        %v540 = vpop.permute.xlu0 %539
        %541 = vrot.lane.b32.xlu0 %v430, 64
        %v542 = vpop.permute.xlu0 %541
        %543 = vrot.lane.b32.xlu0 %v431, 64
        %v544 = vpop.permute.xlu0 %543
        %545 = vrot.lane.b32.xlu0 %v432, 64
        %v546 = vpop.permute.xlu0 %545
        %547 = vrot.lane.b32.xlu0 %v433, 64
        %v548 = vpop.permute.xlu0 %547
        %549 = vrot.lane.b32.xlu0 %v434, 64
        %v550 = vpop.permute.xlu0 %549
        %551 = vrot.lane.b32.xlu0 %v435, 64
        %v552 = vpop.permute.xlu0 %551
        %553 = vrot.lane.b32.xlu0 %v492, 64
        %v554 = vpop.permute.xlu0 %553
        %555 = vrot.lane.b32.xlu0 %v428, 64
        %v556 = vpop.permute.xlu0 %555
        %vm557 = vcmask 64512
        %v559 = vsel %vm557, %v339, %v405
        %v561 = vsel %vm557, %v340, %v407
        %v563 = vsel %vm557, %v341, %v409
        %v565 = vsel %vm557, %v342, %v411
        %v567 = vsel %vm557, %v343, %v413
        %v569 = vsel %vm557, %v344, %v415
        %v571 = vsel %vm557, %v345, %v417
        %v573 = vsel %vm557, %v346, %v419
        %vm574 = vcmask 130048
        %v576 = vsel %vm574, %v559, %v437
        %v578 = vsel %vm574, %v561, %v439
        %v580 = vsel %vm574, %v563, %v441
        %v582 = vsel %vm574, %v565, %v443
        %v584 = vsel %vm574, %v567, %v445
        %v586 = vsel %vm574, %v569, %v447
        %v588 = vsel %vm574, %v571, %v449
        %v590 = vsel %vm574, %v573, %v451
        %vm591 = vcmask 195584
        %v593 = vsel %vm591, %v576, %v454
        %v595 = vsel %vm591, %v578, %v456
        %v597 = vsel %vm591, %v580, %v458
        %v599 = vsel %vm591, %v582, %v460
        %v601 = vsel %vm591, %v584, %v462
        %v603 = vsel %vm591, %v586, %v464
        %v605 = vsel %vm591, %v588, %v466
        %v607 = vsel %vm591, %v590, %v468
        %vm608 = vcmask 261120
        %v610 = vsel %vm608, %v593, %v477
        %v612 = vsel %vm608, %v595, %v479
        %v614 = vsel %vm608, %v597, %v481
        %v616 = vsel %vm608, %v599, %v483
        %v618 = vsel %vm608, %v601, %v485
        %v620 = vsel %vm608, %v603, %v487
        %v622 = vsel %vm608, %v605, %v489
        %v624 = vsel %vm608, %v607, %v491
        %vm625 = vcmask 326656
        %v627 = vsel %vm625, %v610, %v494
        %v629 = vsel %vm625, %v612, %v496
        %v631 = vsel %vm625, %v614, %v498
        %v633 = vsel %vm625, %v616, %v500
        %v635 = vsel %vm625, %v618, %v502
        %v637 = vsel %vm625, %v620, %v504
        %v639 = vsel %vm625, %v622, %v506
        %v641 = vsel %vm625, %v624, %v508
        %vm642 = vcmask 392192
        %v644 = vsel %vm642, %v627, %v510
        %v646 = vsel %vm642, %v629, %v512
        %v648 = vsel %vm642, %v631, %v514
        %v650 = vsel %vm642, %v633, %v516
        %v652 = vsel %vm642, %v635, %v518
        %v654 = vsel %vm642, %v637, %v520
        %v656 = vsel %vm642, %v639, %v522
        %v658 = vsel %vm642, %v641, %v524
        %vm659 = vcmask 457728
        %v661 = vsel %vm659, %v644, %v526
        %v663 = vsel %vm659, %v646, %v528
        %v665 = vsel %vm659, %v648, %v530
        %v667 = vsel %vm659, %v650, %v532
        %v669 = vsel %vm659, %v652, %v534
        %v671 = vsel %vm659, %v654, %v536
        %v673 = vsel %vm659, %v656, %v538
        %v675 = vsel %vm659, %v658, %v540
        %vm676 = vcmask 523264
        %v678 = vsel %vm676, %v661, %v542
        %v680 = vsel %vm676, %v663, %v544
        %v682 = vsel %vm676, %v665, %v546
        %v684 = vsel %vm676, %v667, %v548
        %v686 = vsel %vm676, %v669, %v550
        %v688 = vsel %vm676, %v671, %v552
        %v690 = vsel %vm676, %v673, %v554
        %v692 = vsel %vm676, %v675, %v556
        %v693 = vld [vmem:[%s2] sm:$0xf]
        %v694 = vld [vmem:[%s2 + $0x4] sm:$0xf]
        %v695 = vld [vmem:[%s2 + $0x8] sm:$0xf]
        %v696 = vld [vmem:[%s2 + $0xc] sm:$0xf]
        %v697 = vld [vmem:[%s2 + $0x10] sm:$0xf]
        %v698 = vld [vmem:[%s2 + $0x14] sm:$0xf]
        %v699 = vld [vmem:[%s2 + $0x18] sm:$0xf]
        %v700 = vld [vmem:[%s2 + $0x1c] sm:$0xf]
        %v701 = vld [vmem:[%s2 + $0x20] sm:$0xf]
        %v702 = vld [vmem:[%s242] sm:$0xf]
        %v703 = vld [vmem:[%s242 + $0x4] sm:$0xf]
        %v704 = vld [vmem:[%s242 + $0x8] sm:$0xf]
        %v705 = vld [vmem:[%s242 + $0xc] sm:$0xf]
        %v706 = vld [vmem:[%s242 + $0x10] sm:$0xf]
        %v707 = vld [vmem:[%s242 + $0x14] sm:$0xf]
        %v708 = vld [vmem:[%s242 + $0x18] sm:$0xf]
        %v709 = vld [vmem:[%s242 + $0x1c] sm:$0xf]
        %v711 = vshrl.u32 %v702, 16
        %v713 = vrot.slane %v711, 7
        %v714 = vshll.u32 %v702, 16
        %v716 = vor.u32 %v713, %v714
        %v718 = vshrl.u32 %v703, 16
        %v720 = vrot.slane %v718, 7
        %v721 = vshll.u32 %v703, 16
        %v723 = vor.u32 %v720, %v721
        %v725 = vshrl.u32 %v704, 16
        %v727 = vrot.slane %v725, 7
        %v728 = vshll.u32 %v704, 16
        %v730 = vor.u32 %v727, %v728
        %v732 = vshrl.u32 %v705, 16
        %v734 = vrot.slane %v732, 7
        %v735 = vshll.u32 %v705, 16
        %v737 = vor.u32 %v734, %v735
        %v739 = vshrl.u32 %v706, 16
        %v741 = vrot.slane %v739, 7
        %v742 = vshll.u32 %v706, 16
        %v744 = vor.u32 %v741, %v742
        %v746 = vshrl.u32 %v707, 16
        %v748 = vrot.slane %v746, 7
        %v749 = vshll.u32 %v707, 16
        %v751 = vor.u32 %v748, %v749
        %v753 = vshrl.u32 %v708, 16
        %v755 = vrot.slane %v753, 7
        %v756 = vshll.u32 %v708, 16
        %v758 = vor.u32 %v755, %v756
        %v760 = vshrl.u32 %v709, 16
        %v762 = vrot.slane %v760, 7
        %v763 = vshll.u32 %v709, 16
        %v765 = vor.u32 %v762, %v763
        %v774 = vsel %vm326, 0, %v716
        %v775 = vsel %vm326, 0, %v723
        %v776 = vsel %vm326, 0, %v730
        %v777 = vsel %vm326, 0, %v737
        %v778 = vsel %vm326, 0, %v744
        %v779 = vsel %vm326, 0, %v751
        %v780 = vsel %vm326, 0, %v758
        %v781 = vsel %vm326, 0, %v765
        %v782 = vsel %vm338, %v774, 0
        %v783 = vsel %vm338, %v775, 0
        %v784 = vsel %vm338, %v776, 0
        %v785 = vsel %vm338, %v777, 0
        %v786 = vsel %vm338, %v778, 0
        %v787 = vsel %vm338, %v779, 0
        %v788 = vsel %vm338, %v780, 0
        %v789 = vsel %vm338, %v781, 0
        %v791 = vshrl.u32 %v782, 16
        %v793 = vshll.u32 %v782, 16
        %v795 = vrot.slane %v793, 1
        %v796 = vor.u32 %v791, %v795
        %v798 = vshrl.u32 %v783, 16
        %v800 = vshll.u32 %v783, 16
        %v802 = vrot.slane %v800, 1
        %v803 = vor.u32 %v798, %v802
        %v805 = vshrl.u32 %v784, 16
        %v807 = vshll.u32 %v784, 16
        %v809 = vrot.slane %v807, 1
        %v810 = vor.u32 %v805, %v809
        %v812 = vshrl.u32 %v785, 16
        %v814 = vshll.u32 %v785, 16
        %v816 = vrot.slane %v814, 1
        %v817 = vor.u32 %v812, %v816
        %v819 = vshrl.u32 %v786, 16
        %v821 = vshll.u32 %v786, 16
        %v823 = vrot.slane %v821, 1
        %v824 = vor.u32 %v819, %v823
        %v826 = vshrl.u32 %v787, 16
        %v828 = vshll.u32 %v787, 16
        %v830 = vrot.slane %v828, 1
        %v831 = vor.u32 %v826, %v830
        %v833 = vshrl.u32 %v788, 16
        %v835 = vshll.u32 %v788, 16
        %v837 = vrot.slane %v835, 1
        %v838 = vor.u32 %v833, %v837
        %839 = vrot.lane.b32.xlu0 %v354, 16
        %v840 = vpop.permute.xlu0 %839
        %841 = vrot.lane.b32.xlu0 %v796, 16
        %v842 = vpop.permute.xlu0 %841
        %843 = vrot.lane.b32.xlu0 %v803, 16
        %v844 = vpop.permute.xlu0 %843
        %845 = vrot.lane.b32.xlu0 %v810, 16
        %v846 = vpop.permute.xlu0 %845
        %847 = vrot.lane.b32.xlu0 %v817, 16
        %v848 = vpop.permute.xlu0 %847
        %849 = vrot.lane.b32.xlu0 %v824, 16
        %v850 = vpop.permute.xlu0 %849
        %851 = vrot.lane.b32.xlu0 %v831, 16
        %v852 = vpop.permute.xlu0 %851
        %853 = vrot.lane.b32.xlu0 %v838, 16
        %v854 = vpop.permute.xlu0 %853
        %v862 = vrot.slane %v782, 1
        %v863 = vrot.slane %v783, 1
        %v864 = vrot.slane %v784, 1
        %v865 = vrot.slane %v785, 1
        %v866 = vrot.slane %v786, 1
        %v867 = vrot.slane %v787, 1
        %v868 = vrot.slane %v788, 1
        %869 = vrot.lane.b32.xlu0 %v428, 32
        %v870 = vpop.permute.xlu0 %869
        %871 = vrot.lane.b32.xlu0 %v862, 32
        %v872 = vpop.permute.xlu0 %871
        %873 = vrot.lane.b32.xlu0 %v863, 32
        %v874 = vpop.permute.xlu0 %873
        %875 = vrot.lane.b32.xlu0 %v864, 32
        %v876 = vpop.permute.xlu0 %875
        %877 = vrot.lane.b32.xlu0 %v865, 32
        %v878 = vpop.permute.xlu0 %877
        %879 = vrot.lane.b32.xlu0 %v866, 32
        %v880 = vpop.permute.xlu0 %879
        %881 = vrot.lane.b32.xlu0 %v867, 32
        %v882 = vpop.permute.xlu0 %881
        %883 = vrot.lane.b32.xlu0 %v868, 32
        %v884 = vpop.permute.xlu0 %883
        %886 = vrot.lane.b32.xlu0 %v782, 48
        %v887 = vpop.permute.xlu0 %886
        %888 = vrot.lane.b32.xlu0 %v783, 48
        %v889 = vpop.permute.xlu0 %888
        %890 = vrot.lane.b32.xlu0 %v784, 48
        %v891 = vpop.permute.xlu0 %890
        %892 = vrot.lane.b32.xlu0 %v785, 48
        %v893 = vpop.permute.xlu0 %892
        %894 = vrot.lane.b32.xlu0 %v786, 48
        %v895 = vpop.permute.xlu0 %894
        %896 = vrot.lane.b32.xlu0 %v787, 48
        %v897 = vpop.permute.xlu0 %896
        %898 = vrot.lane.b32.xlu0 %v788, 48
        %v899 = vpop.permute.xlu0 %898
        %900 = vrot.lane.b32.xlu0 %v789, 48
        %v901 = vpop.permute.xlu0 %900
        %v903 = vshrl.u32 %v789, 16
        %v905 = vshll.u32 %v789, 16
        %v907 = vrot.slane %v905, 1
        %v908 = vor.u32 %v903, %v907
        %909 = vrot.lane.b32.xlu0 %v796, 64
        %v910 = vpop.permute.xlu0 %909
        %911 = vrot.lane.b32.xlu0 %v803, 64
        %v912 = vpop.permute.xlu0 %911
        %913 = vrot.lane.b32.xlu0 %v810, 64
        %v914 = vpop.permute.xlu0 %913
        %915 = vrot.lane.b32.xlu0 %v817, 64
        %v916 = vpop.permute.xlu0 %915
        %917 = vrot.lane.b32.xlu0 %v824, 64
        %v918 = vpop.permute.xlu0 %917
        %919 = vrot.lane.b32.xlu0 %v831, 64
        %v920 = vpop.permute.xlu0 %919
        %921 = vrot.lane.b32.xlu0 %v838, 64
        %v922 = vpop.permute.xlu0 %921
        %923 = vrot.lane.b32.xlu0 %v908, 64
        %v924 = vpop.permute.xlu0 %923
        %v925 = vrot.slane %v789, 1
        %926 = vrot.lane.b32.xlu0 %v862, 80
        %v927 = vpop.permute.xlu0 %926
        %928 = vrot.lane.b32.xlu0 %v863, 80
        %v929 = vpop.permute.xlu0 %928
        %930 = vrot.lane.b32.xlu0 %v864, 80
        %v931 = vpop.permute.xlu0 %930
        %932 = vrot.lane.b32.xlu0 %v865, 80
        %v933 = vpop.permute.xlu0 %932
        %934 = vrot.lane.b32.xlu0 %v866, 80
        %v935 = vpop.permute.xlu0 %934
        %936 = vrot.lane.b32.xlu0 %v867, 80
        %v937 = vpop.permute.xlu0 %936
        %938 = vrot.lane.b32.xlu0 %v868, 80
        %v939 = vpop.permute.xlu0 %938
        %940 = vrot.lane.b32.xlu0 %v925, 80
        %v941 = vpop.permute.xlu0 %940
        %942 = vrot.lane.b32.xlu0 %v783, 96
        %v943 = vpop.permute.xlu0 %942
        %944 = vrot.lane.b32.xlu0 %v784, 96
        %v945 = vpop.permute.xlu0 %944
        %946 = vrot.lane.b32.xlu0 %v785, 96
        %v947 = vpop.permute.xlu0 %946
        %948 = vrot.lane.b32.xlu0 %v786, 96
        %v949 = vpop.permute.xlu0 %948
        %950 = vrot.lane.b32.xlu0 %v787, 96
        %v951 = vpop.permute.xlu0 %950
        %952 = vrot.lane.b32.xlu0 %v788, 96
        %v953 = vpop.permute.xlu0 %952
        %954 = vrot.lane.b32.xlu0 %v789, 96
        %v955 = vpop.permute.xlu0 %954
        %956 = vrot.lane.b32.xlu0 %v339, 96
        %v957 = vpop.permute.xlu0 %956
        %958 = vrot.lane.b32.xlu0 %v803, 112
        %v959 = vpop.permute.xlu0 %958
        %960 = vrot.lane.b32.xlu0 %v810, 112
        %v961 = vpop.permute.xlu0 %960
        %962 = vrot.lane.b32.xlu0 %v817, 112
        %v963 = vpop.permute.xlu0 %962
        %964 = vrot.lane.b32.xlu0 %v824, 112
        %v965 = vpop.permute.xlu0 %964
        %966 = vrot.lane.b32.xlu0 %v831, 112
        %v967 = vpop.permute.xlu0 %966
        %968 = vrot.lane.b32.xlu0 %v838, 112
        %v969 = vpop.permute.xlu0 %968
        %970 = vrot.lane.b32.xlu0 %v908, 112
        %v971 = vpop.permute.xlu0 %970
        %972 = vrot.lane.b32.xlu0 %v354, 112
        %v973 = vpop.permute.xlu0 %972
        %v975 = vsel %vm574, %v339, %v840
        %v977 = vsel %vm574, %v782, %v842
        %v979 = vsel %vm574, %v783, %v844
        %v981 = vsel %vm574, %v784, %v846
        %v983 = vsel %vm574, %v785, %v848
        %v985 = vsel %vm574, %v786, %v850
        %v987 = vsel %vm574, %v787, %v852
        %v989 = vsel %vm574, %v788, %v854
        %v991 = vsel %vm608, %v975, %v870
        %v993 = vsel %vm608, %v977, %v872
        %v995 = vsel %vm608, %v979, %v874
        %v997 = vsel %vm608, %v981, %v876
        %v999 = vsel %vm608, %v983, %v878
        %v1001 = vsel %vm608, %v985, %v880
        %v1003 = vsel %vm608, %v987, %v882
        %v1005 = vsel %vm608, %v989, %v884
        %v1007 = vsel %vm642, %v991, %v887
        %v1009 = vsel %vm642, %v993, %v889
        %v1011 = vsel %vm642, %v995, %v891
        %v1013 = vsel %vm642, %v997, %v893
        %v1015 = vsel %vm642, %v999, %v895
        %v1017 = vsel %vm642, %v1001, %v897
        %v1019 = vsel %vm642, %v1003, %v899
        %v1021 = vsel %vm642, %v1005, %v901
        %v1023 = vsel %vm676, %v1007, %v910
        %v1025 = vsel %vm676, %v1009, %v912
        %v1027 = vsel %vm676, %v1011, %v914
        %v1029 = vsel %vm676, %v1013, %v916
        %v1031 = vsel %vm676, %v1015, %v918
        %v1033 = vsel %vm676, %v1017, %v920
        %v1035 = vsel %vm676, %v1019, %v922
        %v1037 = vsel %vm676, %v1021, %v924
        %vm1038 = vcmask 654336
        %v1040 = vsel %vm1038, %v1023, %v927
        %v1042 = vsel %vm1038, %v1025, %v929
        %v1044 = vsel %vm1038, %v1027, %v931
        %v1046 = vsel %vm1038, %v1029, %v933
        %v1048 = vsel %vm1038, %v1031, %v935
        %v1050 = vsel %vm1038, %v1033, %v937
        %v1052 = vsel %vm1038, %v1035, %v939
        %v1054 = vsel %vm1038, %v1037, %v941
        %vm1055 = vcmask 785408
        %v1057 = vsel %vm1055, %v1040, %v943
        %v1059 = vsel %vm1055, %v1042, %v945
        %v1061 = vsel %vm1055, %v1044, %v947
        %v1063 = vsel %vm1055, %v1046, %v949
        %v1065 = vsel %vm1055, %v1048, %v951
        %v1067 = vsel %vm1055, %v1050, %v953
        %v1069 = vsel %vm1055, %v1052, %v955
        %v1071 = vsel %vm1055, %v1054, %v957
        %vm1072 = vcmask 916480
        %v1074 = vsel %vm1072, %v1057, %v959
        %v1076 = vsel %vm1072, %v1059, %v961
        %v1078 = vsel %vm1072, %v1061, %v963
        %v1080 = vsel %vm1072, %v1063, %v965
        %v1082 = vsel %vm1072, %v1065, %v967
        %v1084 = vsel %vm1072, %v1067, %v969
        %v1086 = vsel %vm1072, %v1069, %v971
        %v1088 = vsel %vm1072, %v1071, %v973
        %v1097 = vunpack.c.l.b16 %v1074
        %v1098 = vunpack.c.l.b16 %v863
        %v1099 = vunpack.c.l.b16 %v1076
        %v1100 = vunpack.c.l.b16 %v864
        %v1101 = vunpack.c.l.b16 %v1078
        %v1102 = vunpack.c.l.b16 %v865
        %v1103 = vunpack.c.l.b16 %v1080
        %v1104 = vunpack.c.l.b16 %v866
        %v1105 = vunpack.c.l.b16 %v1082
        %v1106 = vunpack.c.l.b16 %v867
        %v1107 = vunpack.c.l.b16 %v1084
        %v1108 = vunpack.c.l.b16 %v868
        %v1109 = vunpack.c.l.b16 %v1086
        %v1110 = vunpack.c.l.b16 %v925
        %v1111 = vunpack.c.l.b16 %v1088
        %v1112 = vunpack.c.l.b16 %v428
        %v1113 = vld [vmem:[%s3] sm:$0xf]
        %v1114 = vld [vmem:[%s3 + $0x4] sm:$0xf]
        %v1115 = vld [vmem:[%s3 + $0x8] sm:$0xf]
        %v1116 = vld [vmem:[%s3 + $0xc] sm:$0xf]
        %v1117 = vld [vmem:[%s3 + $0x10] sm:$0xf]
        %v1118 = vld [vmem:[%s3 + $0x14] sm:$0xf]
        %v1119 = vld [vmem:[%s3 + $0x18] sm:$0xf]
        %v1120 = vld [vmem:[%s3 + $0x1c] sm:$0xf]
        %v1121 = vld [vmem:[%s3 + $0x20] sm:$0xf]
        %v1122 = vld [vmem:[%s3 + $0x24] sm:$0xf]
        %v1123 = vld [vmem:[%s3 + $0x28] sm:$0xf]
        %v1124 = vld [vmem:[%s3 + $0x2c] sm:$0xf]
        %v1125 = vld [vmem:[%s3 + $0x30] sm:$0xf]
        %v1126 = vld [vmem:[%s3 + $0x34] sm:$0xf]
        %v1127 = vld [vmem:[%s3 + $0x38] sm:$0xf]
        %v1128 = vld [vmem:[%s3 + $0x3c] sm:$0xf]
        %v1129 = vld [vmem:[%s3 + $0x40] sm:$0xf]
        %v1130 = vld [vmem:[%s3 + $0x44] sm:$0xf]
        %v1131 = vpack.c.b16 %v1099, %v1097
        %v1132 = vpack.c.b16 %v1100, %v1098
        %v1133 = vpack.c.b16 %v1103, %v1101
        %v1134 = vpack.c.b16 %v1104, %v1102
        %v1135 = vpack.c.b16 %v1107, %v1105
        %v1136 = vpack.c.b16 %v1108, %v1106
        %v1137 = vpack.c.b16 %v1111, %v1109
        %v1138 = vpack.c.b16 %v1112, %v1110
        %v1161 = vunpack.c.l.b16 %v1113
        %v1162 = vunpack.c.l.b16 %v1114
        %v1163 = vunpack.c.l.b16 %v1115
        %v1164 = vunpack.c.l.b16 %v1116
        %v1165 = vunpack.c.l.b16 %v1117
        %v1166 = vunpack.c.l.b16 %v1118
        %v1167 = vunpack.c.l.b16 %v1119
        %v1168 = vunpack.c.l.b16 %v1120
        %v1169 = vunpack.c.l.b16 %v1121
        %v1170 = vunpack.c.l.b16 %v1122
        %v1171 = vunpack.c.l.b16 %v1123
        %v1172 = vunpack.c.l.b16 %v1124
        %v1173 = vunpack.c.l.b16 %v1125
        %v1174 = vunpack.c.l.b16 %v1126
        %v1175 = vunpack.c.l.b16 %v1127
        %v1176 = vunpack.c.l.b16 %v1128
        %v1177 = vunpack.c.l.b16 %v1129
        %v1178 = vunpack.c.l.b16 %v1130
        %v1179 = vpack.c.b16 %v1162, %v1161
        %v1180 = vpack.c.b16 %v1164, %v1163
        %v1181 = vpack.c.b16 %v1166, %v1165
        %v1182 = vpack.c.b16 %v1168, %v1167
        %v1183 = vpack.c.b16 %v1170, %v1169
        %v1184 = vpack.c.b16 %v1172, %v1171
        %v1185 = vpack.c.b16 %v1174, %v1173
        %v1186 = vpack.c.b16 %v1176, %v1175
        %v1187 = vpack.c.b16 %v1178, %v1177
        %v1198 = vsel %vm574, %v1132, 0
        %v1201 = vsel %vm574, %v1134, 0
        %v1204 = vsel %vm574, %v1136, 0
        %v1207 = vsel %vm574, %v1138, 0
        %1209 = vmatprep.subr.bf16.mxu0 0
        %1210 = vmatpush1.bf16.msra.mxu0 %v1179
        %1211 = vmatprep.subr.bf16.mxu0 0
        %1212 = vmatpush1.bf16.msra.mxu0 %v1180
        %1213 = vmatprep.subr.bf16.mxu0 0
        %1214 = vmatpush1.bf16.msra.mxu0 %v1181
        %1215 = vmatprep.subr.bf16.mxu0 0
        %1216 = vmatpush1.bf16.msra.mxu0 %v1182
        %1217 = vmatprep.subr.bf16.mxu0 0
        %1218 = vmatpush1.bf16.msra.mxu0 %v1183
        %1219 = vmatprep.subr.bf16.mxu0 0
        %1220 = vmatpush1.bf16.msra.mxu0 %v1184
        %1221 = vmatprep.subr.bf16.mxu0 0
        %1222 = vmatpush1.bf16.msra.mxu0 %v1185
        %1223 = vmatprep.subr.bf16.mxu0 0
        %1224 = vmatpush1.bf16.msra.mxu0 %v1186
        %1225 = vmatprep.subr.bf16.mxu0 0
        %1226 = vmatpush1.bf16.msra.mxu0 %v1187
        %1227 = vmatprep.subr.bf16.mxu0 0
        %1228 = vmatpush1.bf16.msra.mxu0 0
        %1229 = vmatprep.subr.bf16.mxu0 0
        %1230 = vmatpush1.bf16.msra.mxu0 0
        %1231 = vmatprep.subr.bf16.mxu0 0
        %1232 = vmatpush1.bf16.msra.mxu0 0
        %1233 = vmatprep.subr.bf16.mxu0 0
        %1234 = vmatpush1.bf16.msra.mxu0 0
        %1235 = vmatprep.subr.bf16.mxu0 0
        %1236 = vmatpush1.bf16.msra.mxu0 0
        %1237 = vmatprep.subr.bf16.mxu0 0
        %1238 = vmatpush1.bf16.msra.mxu0 0
        %1239 = vmatprep.subr.bf16.mxu0 0
        %1240 = vmatpush1.bf16.msra.mxu0 0
        %1241 = vmatprep.mubr.bf16.mxu0 %v1198
        %1242 = vmatmul.mubr.bf16.gmra.mrb[0].mxu0 %v1131
        %v1243 = vpop.f32.mrb[0].mxu0
        %v1244 = vadd.f32 0.0, %v1243
        %v1245 = vpop.f32.mrb[0].mxu0
        %v1246 = vpop.f32.mrb[0].mxu0
        %v1247 = vadd.f32 0.0, %v1246
        %v1248 = vpop.f32.mrb[0].mxu0
        %1249 = vmatprep.mubr.bf16.mxu0 %v1201
        %1250 = vmatmul.mubr.bf16.gmra.mrb[0].mxu0 %v1133
        %v1251 = vpop.f32.mrb[0].mxu0
        %v1252 = vadd.f32 0.0, %v1251
        %v1253 = vpop.f32.mrb[0].mxu0
        %v1254 = vpop.f32.mrb[0].mxu0
        %v1255 = vadd.f32 0.0, %v1254
        %v1256 = vpop.f32.mrb[0].mxu0
        %1257 = vmatprep.mubr.bf16.mxu0 %v1204
        %1258 = vmatmul.mubr.bf16.gmra.mrb[0].mxu0 %v1135
        %v1259 = vpop.f32.mrb[0].mxu0
        %v1260 = vadd.f32 0.0, %v1259
        %v1261 = vpop.f32.mrb[0].mxu0
        %v1262 = vpop.f32.mrb[0].mxu0
        %v1263 = vadd.f32 0.0, %v1262
        %v1264 = vpop.f32.mrb[0].mxu0
        %1265 = vmatprep.mubr.bf16.mxu0 %v1207
        %1266 = vmatmul.mubr.bf16.gmra.mrb[0].mxu0 %v1137
        %v1267 = vpop.f32.mrb[0].mxu0
        %v1268 = vadd.f32 0.0, %v1267
        %v1269 = vpop.f32.mrb[0].mxu0
        %v1270 = vpop.f32.mrb[0].mxu0
        %v1271 = vadd.f32 0.0, %v1270
        %v1272 = vpop.f32.mrb[0].mxu0
        %1273 = vdwg.mxu0
        %v1282 = vunpack.c.l.b16 %v678
        %v1283 = vunpack.c.l.b16 %v680
        %v1284 = vunpack.c.l.b16 %v682
        %v1285 = vunpack.c.l.b16 %v684
        %v1286 = vunpack.c.l.b16 %v686
        %v1287 = vunpack.c.l.b16 %v688
        %v1288 = vunpack.c.l.b16 %v690
        %v1289 = vunpack.c.l.b16 %v692
        %v1290 = vpack.c.b16 %v1283, %v1282
        %v1291 = vpack.c.b16 %v1285, %v1284
        %v1292 = vpack.c.b16 %v1287, %v1286
        %v1293 = vpack.c.b16 %v1289, %v1288
        %v1303 = vunpack.c.l.b16 %v693
        %v1304 = vunpack.c.l.b16 %v694
        %v1305 = vunpack.c.l.b16 %v695
        %v1306 = vunpack.c.l.b16 %v696
        %v1307 = vunpack.c.l.b16 %v697
        %v1308 = vunpack.c.l.b16 %v698
        %v1309 = vunpack.c.l.b16 %v699
        %v1310 = vunpack.c.l.b16 %v700
        %v1311 = vunpack.c.l.b16 %v701
        %v1312 = vpack.c.b16 %v1304, %v1303
        %v1313 = vpack.c.b16 %v1306, %v1305
        %v1314 = vpack.c.b16 %v1308, %v1307
        %v1315 = vpack.c.b16 %v1310, %v1309
        %v1316 = vpack.c.b16 %v1311, %v1311
        %vm1321 = vcmask 588800
        %v1323 = vsel %vm1321, %v1290, 0
        %v1326 = vsel %vm1321, %v1291, 0
        %v1329 = vsel %vm1321, %v1292, 0
        %v1332 = vsel %vm1321, %v1293, 0
        %vm1334 = vcmask 1043456
        %v1336 = vsel %vm1334, %v1316, 0
        %1338 = vmatprep.subr.bf16.mxu0 0
        %1339 = vmatpush1.bf16.msra.mxu0 %v1312
        %1340 = vmatprep.subr.bf16.mxu0 0
        %1341 = vmatpush1.bf16.msra.mxu0 %v1313
        %1342 = vmatprep.subr.bf16.mxu0 0
        %1343 = vmatpush1.bf16.msra.mxu0 %v1314
        %1344 = vmatprep.subr.bf16.mxu0 0
        %1345 = vmatpush1.bf16.msra.mxu0 %v1315
        %1346 = vmatprep.subr.bf16.mxu0 0
        %1347 = vmatpush1.bf16.msra.mxu0 %v1336
        %1348 = vmatprep.subr.bf16.mxu0 0
        %1349 = vmatpush1.bf16.msra.mxu0 0
        %1350 = vmatprep.subr.bf16.mxu0 0
        %1351 = vmatpush1.bf16.msra.mxu0 0
        %1352 = vmatprep.subr.bf16.mxu0 0
        %1353 = vmatpush1.bf16.msra.mxu0 0
        %1354 = vmatprep.subr.bf16.mxu0 0
        %1355 = vmatpush1.bf16.msra.mxu0 0
        %1356 = vmatprep.subr.bf16.mxu0 0
        %1357 = vmatpush1.bf16.msra.mxu0 0
        %1358 = vmatprep.subr.bf16.mxu0 0
        %1359 = vmatpush1.bf16.msra.mxu0 0
        %1360 = vmatprep.subr.bf16.mxu0 0
        %1361 = vmatpush1.bf16.msra.mxu0 0
        %1362 = vmatprep.subr.bf16.mxu0 0
        %1363 = vmatpush1.bf16.msra.mxu0 0
        %1364 = vmatprep.subr.bf16.mxu0 0
        %1365 = vmatpush1.bf16.msra.mxu0 0
        %1366 = vmatprep.subr.bf16.mxu0 0
        %1367 = vmatpush1.bf16.msra.mxu0 0
        %1368 = vmatprep.subr.bf16.mxu0 0
        %1369 = vmatpush1.bf16.msra.mxu0 0
        %1370 = vmatprep.mubr.bf16.mxu0 0
        %1371 = vmatmul.mubr.bf16.gmra.mrb[0].mxu0 %v1323
        %v1372 = vpop.f32.mrb[0].mxu0
        %v1373 = vadd.f32 %v1244, %v1372
        %v1374 = vpop.f32.mrb[0].mxu0
        %v1375 = vpop.f32.mrb[0].mxu0
        %v1376 = vadd.f32 %v1247, %v1375
        %v1377 = vpop.f32.mrb[0].mxu0
        %1378 = vmatprep.mubr.bf16.mxu0 0
        %1379 = vmatmul.mubr.bf16.gmra.mrb[0].mxu0 %v1326
        %v1380 = vpop.f32.mrb[0].mxu0
        %v1381 = vadd.f32 %v1252, %v1380
        %v1382 = vpop.f32.mrb[0].mxu0
        %v1383 = vpop.f32.mrb[0].mxu0
        %v1384 = vadd.f32 %v1255, %v1383
        %v1385 = vpop.f32.mrb[0].mxu0
        %1386 = vmatprep.mubr.bf16.mxu0 0
        %1387 = vmatmul.mubr.bf16.gmra.mrb[0].mxu0 %v1329
        %v1388 = vpop.f32.mrb[0].mxu0
        %v1389 = vadd.f32 %v1260, %v1388
        %v1390 = vpop.f32.mrb[0].mxu0
        %v1391 = vpop.f32.mrb[0].mxu0
        %v1392 = vadd.f32 %v1263, %v1391
        %v1393 = vpop.f32.mrb[0].mxu0
        %1394 = vmatprep.mubr.bf16.mxu0 0
        %1395 = vmatmul.mubr.bf16.gmra.mrb[0].mxu0 %v1332
        %v1396 = vpop.f32.mrb[0].mxu0
        %v1397 = vadd.f32 %v1268, %v1396
        %v1398 = vpop.f32.mrb[0].mxu0
        %v1399 = vpop.f32.mrb[0].mxu0
        %v1400 = vadd.f32 %v1271, %v1399
        %v1401 = vpop.f32.mrb[0].mxu0
        %1402 = vdwg.mxu0
        %v1403 = vld [vmem:[%s4] sm:$0x1]
        %v1405 = vlaneseq
        %v1406 = vshrl.u32 %v1405, 7
        %v1407 = vsub.s32 0, %v1406
        %v1408 = vrot.slane %v1403, %v1407
        %v1410 = vadd.f32 %v1373, %v1408
        %v1411 = vadd.f32 %v1376, %v1408
        %v1412 = vadd.f32 %v1381, %v1408
        %v1413 = vadd.f32 %v1384, %v1408
        %v1414 = vadd.f32 %v1389, %v1408
        %v1415 = vadd.f32 %v1392, %v1408
        %v1416 = vadd.f32 %v1397, %v1408
        %v1417 = vadd.f32 %v1400, %v1408
        %v1418 = vmax.f32 %v1410, 0.0
        %v1419 = vmax.f32 %v1411, 0.0
        %v1420 = vmax.f32 %v1412, 0.0
        %v1421 = vmax.f32 %v1413, 0.0
        %v1422 = vmax.f32 %v1414, 0.0
        %v1423 = vmax.f32 %v1415, 0.0
        %v1424 = vmax.f32 %v1416, 0.0
        %v1425 = vmax.f32 %v1417, 0.0
        %v1426 = vpack.c.bf16 %v1418, %v1418
        %v1427 = vpack.c.bf16 %v1419, %v1419
        %v1428 = vpack.c.bf16 %v1420, %v1420
        %v1429 = vpack.c.bf16 %v1421, %v1421
        %v1430 = vpack.c.bf16 %v1422, %v1422
        %v1431 = vpack.c.bf16 %v1423, %v1423
        %v1432 = vpack.c.bf16 %v1424, %v1424
        %v1433 = vpack.c.bf16 %v1425, %v1425
        %vm1434 = vcmask 125952
        %1435 = vst.msk [vmem:[%s232] sm:$0xf] %vm1434, %v1426
        %1436 = vst.msk [vmem:[%s232 + $0x4] sm:$0xf] %vm1434, %v1427
        %1437 = vst.msk [vmem:[%s232 + $0x8] sm:$0xf] %vm1434, %v1428
        %1438 = vst.msk [vmem:[%s232 + $0xc] sm:$0xf] %vm1434, %v1429
        %1439 = vst.msk [vmem:[%s232 + $0x10] sm:$0xf] %vm1434, %v1430
        %1440 = vst.msk [vmem:[%s232 + $0x14] sm:$0xf] %vm1434, %v1431
        %1441 = vst.msk [vmem:[%s232 + $0x18] sm:$0xf] %vm1434, %v1432
        %1442 = vst.msk [vmem:[%s232 + $0x1c] sm:$0xf] %vm1434, %v1433
        %s1443 = sand.u32 %s142, 1
        %s1444 = scalar_lea.sflag [#allocation3], %s1443
        %s1445 = sand.u32 %s142, 1
        %s1446 = smul.addr %s1445, 32
        %s1447 = scalar_lea.vmem [#allocation2], %s1446
        // Predicated region
        $region41: #{tpu_custom_call.1} parent=39 // pred_check
          %p1448 = pneg %p152
        $region42: #{tpu_custom_call.1} parent=39 // pred_check_branch
          %1450 = sbr.rel (%p1448) target = $region44
        $region43: #{tpu_custom_call.1} parent=39 // pred_region
          %s1452 = ssub.s32 512, 512
          %1453 = vsyncadd %s1444, %s1452
          %s1454 = smul.addr %s19, 8
          %s1455 = smul.addr %s1454, 64
          %s1456 = scalar_lea.hbm %s5, %s1455
          %s1457 = sshll.u32 %s1447, 4
          %s1458 = int_to_ptr.vmem [resolvable:$true] %s1457
          %1463 = dma.vmem_to_hbm [thread:$0]  %s1458, 512, %s1456, %s1444, 64, 64, 4
        $region44: #{tpu_custom_call.1} parent=39 // pred_fallthru
          _
      $region40: #{tpu_custom_call.1} parent=5 // pred_fallthru
        _
      %p1464 = scmp.le.s32.totalorder 2, %s14
      // Predicated region
      $region45: #{tpu_custom_call.1} parent=5 // pred_check
        %p1465 = pneg %p1464
      $region46: #{tpu_custom_call.1} parent=5 // pred_check_branch
        %1467 = sbr.rel (%p1465) target = $region48
      $region47: #{tpu_custom_call.1} parent=5 // pred_region
        %s1468 = ssub.s32 %s14, 2
        // Predicated region
        $region49: #{tpu_custom_call.1} parent=47 // pred_check
          %p1469 = pneg %p158
        $region50: #{tpu_custom_call.1} parent=47 // pred_check_branch
          %1471 = sbr.rel (%p1469) target = $region52
        $region51: #{tpu_custom_call.1} parent=47 // pred_region
          %s1472 = sand.u32 %s143, 1
          %s1473 = scalar_lea.sflag [#allocation3], %s1472
          %s1474 = sand.u32 %s143, 1
          %s1475 = smul.addr %s1474, 32
          %s1476 = scalar_lea.vmem [#allocation2], %s1475
          %1477 = dma.done %s1473, 512
        $region52: #{tpu_custom_call.1} parent=47 // pred_fallthru
          _
      $region48: #{tpu_custom_call.1} parent=5 // pred_fallthru
        _
    $region6: #{tpu_custom_call.1} parent=1 // loop_footer
      %s18 = sadd.s32 1, %s14
    $region7: #{tpu_custom_call.1} parent=1 // loop_footer_branch
      %13 = sbr.rel target = $region3
    $region8: #{tpu_custom_call.1} parent=1 // loop_exit
      _
    %1478 = vsyncpa [#allocation3], 1
    %s1479 = scalar_lea.sflag [#allocation3], 1
    %1480 = vsyncpa %s1479, 1

</llo_original>
